<compile_context>
chip_gen: v7x
topology: tpu7x:2x2x1
jax: 0.10.0
libtpu: 0.0.40
codegen_flags: <defaults>
</compile_context>

<pallas_src>
import functools
import math

import numpy as np
import jax
import jax.numpy as jnp
from jax import lax
from jax.experimental import pallas as pl
from jax.experimental.pallas import tpu as pltpu

D_MODEL = 64      # TransformerConfig.d_model default
D_FF = 4 * D_MODEL
N_LAYER = 2       # exercise the stacked-layer grid (config default is 1; any value works)
N_TOKENS = 128    # number of entities/tokens (rows of x)
N_BATCH = 4       # number of distinct batch ids
LN_EPS = 1e-5


def _layernorm(x, w, b):
    mu = jnp.mean(x, axis=-1, keepdims=True)
    var = jnp.mean((x - mu) ** 2, axis=-1, keepdims=True)
    return (x - mu) * lax.rsqrt(var + LN_EPS) * w + b


def _gelu_exact(x):
    # matches torch.nn.GELU() (erf formulation)
    return 0.5 * x * (1.0 + lax.erf(x / math.sqrt(2.0)))


def block_kernel(n_batch,
                 bid_row_ref, bid_col_ref, x_ref,
                 w_pool_ref, w1_ref, w2_ref, vecs_ref, b1_ref,
                 out_ref):
    # ---- layer carry: out_ref is resident across the layer grid axis ----
    @pl.when(pl.program_id(0) == 0)
    def _():
        out_ref[...] = x_ref[...]

    x = out_ref[...]                                    # (N, D) f32, result of previous layer
    n = x.shape[0]

    vecs = vecs_ref[...]                                # (6, D) f32 consolidated vector slab
    ln1_w, ln1_b = vecs[0:1, :], vecs[1:2, :]
    b_pool = vecs[2:3, :]
    ln2_w, ln2_b = vecs[3:4, :], vecs[4:5, :]
    b2 = vecs[5:6, :]

    # ---- Pool branch (prepool & proj fused into w_pool / b_pool; pool first) ----
    hln = _layernorm(x, ln1_w, ln1_b)                   # (N, D) f32

    ids_row = bid_row_ref[...]                          # (1, N) int32
    onehot = (lax.broadcasted_iota(jnp.int32, (n_batch, n), 0) == ids_row)
    onehot_f = onehot.astype(jnp.float32)               # (B, N)

    # scatter(reduce='mean') over dim 0  ==  one_hot @ LN1(x) / counts
    sums = jnp.dot(onehot_f.astype(jnp.bfloat16), hln.astype(jnp.bfloat16),
                   preferred_element_type=jnp.float32)  # (B, D) f32 accumulation
    counts = jnp.sum(onehot_f, axis=1, keepdims=True)   # (B, 1)
    mean = sums * pl.reciprocal(jnp.maximum(counts, 1.0), approx=True)

    pooled = jnp.dot(mean.astype(jnp.bfloat16), w_pool_ref[...],
                     preferred_element_type=jnp.float32) + b_pool        # (B, D)

    # gather pooled[batch_index] as broadcast-select (B small & static; no K=B matmul)
    ids_col = bid_col_ref[...]                          # (N, 1) int32
    attn = jnp.zeros_like(x)
    for b in range(n_batch):
        mask = jnp.where(ids_col == b, 1.0, 0.0)        # (N, 1)
        attn = attn + mask * pooled[b:b + 1, :]         # (N, 1) * (1, D) -> (N, D)

    x = x + attn                                        # residual 1 (resid_drop = identity)

    # ---- MLP branch ----
    h = _layernorm(x, ln2_w, ln2_b)
    h = jnp.dot(h.astype(jnp.bfloat16), w1_ref[...],
                preferred_element_type=jnp.float32) + b1_ref[...]        # (N, 4D)
    h = _gelu_exact(h)
    h = jnp.dot(h.astype(jnp.bfloat16), w2_ref[...],
                preferred_element_type=jnp.float32) + b2                  # (N, D)

    out_ref[...] = x + h                                # residual 2 (dropout = identity)


def transformer_forward(x, batch_index, packed, n_batch):
    """Full Transformer.forward (embd dropout is identity in eval mode).

    One pallas_call, grid over layers; per-layer weights are stacked on a leading axis and
    pipelined via BlockSpecs while x stays resident in VMEM as the output-block carry.
    """
    n, d = x.shape
    n_layer = packed["w_pool"].shape[0]
    d_ff = packed["w1"].shape[-1]

    bid_row = batch_index.reshape(1, n).astype(jnp.int32)
    bid_col = batch_index.reshape(n, 1).astype(jnp.int32)

    grid_spec = pltpu.PrefetchScalarGridSpec(
        num_scalar_prefetch=0,
        grid=(n_layer,),
        in_specs=[
            pl.BlockSpec((1, n), lambda l: (0, 0)),            # batch ids, row layout
            pl.BlockSpec((n, 1), lambda l: (0, 0)),            # batch ids, column layout
            pl.BlockSpec((n, d), lambda l: (0, 0)),            # x (read at layer 0 only)
            pl.BlockSpec((None, d, d), lambda l: (l, 0, 0)),   # fused pool weight  (bf16)
            pl.BlockSpec((None, d, d_ff), lambda l: (l, 0, 0)),  # mlp w1 (bf16)
            pl.BlockSpec((None, d_ff, d), lambda l: (l, 0, 0)),  # mlp w2 (bf16)
            pl.BlockSpec((None, 6, d), lambda l: (l, 0, 0)),   # consolidated (6, D) vectors
            pl.BlockSpec((None, 1, d_ff), lambda l: (l, 0, 0)),  # mlp b1
        ],
        out_specs=pl.BlockSpec((n, d), lambda l: (0, 0)),
    )

    return pl.pallas_call(
        functools.partial(block_kernel, n_batch),
        out_shape=jax.ShapeDtypeStruct((n, d), jnp.float32),
        grid_spec=grid_spec,
        compiler_params=pltpu.CompilerParams(
            dimension_semantics=("arbitrary",),   # layer axis is a sequential carry
        ),
    )(bid_row, bid_col, x,
      packed["w_pool"], packed["w1"], packed["w2"], packed["vecs"], packed["b1"])


def init_params(key, n_layer, d_model):
    """Per-layer parameters in PyTorch layout (Linear weight = (out, in)).

    Transformer._init_weights uses N(0, 0.02) weights with zero biases and unit LayerNorm;
    we perturb biases / LN params slightly so that every parameter path (incl. the fused
    bias) is actually exercised by the test — forward semantics are init-independent.
    """
    params = []
    for _ in range(n_layer):
        key, *ks = jax.random.split(key, 13)
        d_ff = 4 * d_model
        params.append({
            "ln1_w": 1.0 + 0.1 * jax.random.normal(ks[0], (d_model,), jnp.float32),
            "ln1_b": 0.02 * jax.random.normal(ks[1], (d_model,), jnp.float32),
            "pre_w": 0.02 * jax.random.normal(ks[2], (d_model, d_model), jnp.float32),
            "pre_b": 0.02 * jax.random.normal(ks[3], (d_model,), jnp.float32),
            "proj_w": 0.02 * jax.random.normal(ks[4], (d_model, d_model), jnp.float32),
            "proj_b": 0.02 * jax.random.normal(ks[5], (d_model,), jnp.float32),
            "ln2_w": 1.0 + 0.1 * jax.random.normal(ks[6], (d_model,), jnp.float32),
            "ln2_b": 0.02 * jax.random.normal(ks[7], (d_model,), jnp.float32),
            "w1": 0.02 * jax.random.normal(ks[8], (d_ff, d_model), jnp.float32),
            "b1": 0.02 * jax.random.normal(ks[9], (d_ff,), jnp.float32),
            "w2": 0.02 * jax.random.normal(ks[10], (d_model, d_ff), jnp.float32),
            "b2": 0.02 * jax.random.normal(ks[11], (d_model,), jnp.float32),
        })
    return params


def pack_params(params):
    """Host-side fusion (prepool∘proj), layer stacking and bf16 weight cast."""
    w_pool, w1, w2, vecs, b1 = [], [], [], [], []
    for p in params:
        wp = p["pre_w"].T @ p["proj_w"].T                       # (D, D) fused pool weight
        bp = p["pre_b"] @ p["proj_w"].T + p["proj_b"]           # (D,)   fused pool bias
        w_pool.append(wp.astype(jnp.bfloat16))
        w1.append(p["w1"].T.astype(jnp.bfloat16))               # (D, 4D)
        w2.append(p["w2"].T.astype(jnp.bfloat16))               # (4D, D)
        vecs.append(jnp.stack([p["ln1_w"], p["ln1_b"], bp,
                               p["ln2_w"], p["ln2_b"], p["b2"]]))   # (6, D)
        b1.append(p["b1"].reshape(1, -1))                       # (1, 4D)
    return {
        "w_pool": jnp.stack(w_pool),                            # (L, D, D)   bf16
        "w1": jnp.stack(w1),                                    # (L, D, 4D)  bf16
        "w2": jnp.stack(w2),                                    # (L, 4D, D)  bf16
        "vecs": jnp.stack(vecs).astype(jnp.float32),            # (L, 6, D)   f32
        "b1": jnp.stack(b1).astype(jnp.float32),                # (L, 1, 4D)  f32
    }


def reference_forward(x, batch_index, params, n_batch):
    """Pure-JAX f32 reference mirroring the PyTorch forward (eval mode, unfused weights)."""
    n = x.shape[0]
    for p in params:
        # Pool branch
        h = _layernorm(x, p["ln1_w"], p["ln1_b"])
        h = h @ p["pre_w"].T + p["pre_b"]
        sums = jax.ops.segment_sum(h, batch_index, num_segments=n_batch)
        counts = jax.ops.segment_sum(jnp.ones((n,), jnp.float32), batch_index,
                                     num_segments=n_batch)
        mean = sums / jnp.maximum(counts, 1.0)[:, None]
        pooled = mean @ p["proj_w"].T + p["proj_b"]
        x = x + pooled[batch_index]
        # MLP branch
        h2 = _layernorm(x, p["ln2_w"], p["ln2_b"])
        h2 = jax.nn.gelu(h2 @ p["w1"].T + p["b1"], approximate=False)
        h2 = h2 @ p["w2"].T + p["b2"]
        x = x + h2
    return x


if __name__ == "__main__":
    key = jax.random.PRNGKey(0)
    kx, kb, kp = jax.random.split(key, 3)

    x = jax.random.normal(kx, (N_TOKENS, D_MODEL), jnp.float32)
    batch_index = jax.random.randint(kb, (N_TOKENS,), 0, N_BATCH, jnp.int32)
    params = init_params(kp, N_LAYER, D_MODEL)
    packed = pack_params(params)

    out = transformer_forward(x, batch_index, packed, N_BATCH)
    out = jax.block_until_ready(out)

    ref = reference_forward(x, batch_index, params, N_BATCH)
    # bf16 matmul operands (f32 accumulation) + fused pool weights: small deviation vs f32 ref.
    np.testing.assert_allclose(np.asarray(out), np.asarray(ref), rtol=5e-3, atol=5e-3)

    print("KERNEL_OK")
</pallas_src>

<mosaic_0001>
module attributes {stable_mosaic.version = 11 : i64} {
  func.func @block_kernel(%arg0: i32, %arg1: memref<1x128xi32, #tpu.memory_space<vmem>>, %arg2: memref<128x1xi32, #tpu.memory_space<vmem>>, %arg3: memref<128x64xf32, #tpu.memory_space<vmem>>, %arg4: memref<1x64x64xbf16, #tpu.memory_space<vmem>>, %arg5: memref<1x64x256xbf16, #tpu.memory_space<vmem>>, %arg6: memref<1x256x64xbf16, #tpu.memory_space<vmem>>, %arg7: memref<1x6x64xf32, #tpu.memory_space<vmem>>, %arg8: memref<1x1x256xf32, #tpu.memory_space<vmem>>, %arg9: memref<128x64xf32, #tpu.memory_space<vmem>>) attributes {dimension_semantics = [#tpu.dimension_semantics<arbitrary>], iteration_bounds = array<i64: 2>, scalar_prefetch = 0 : i64, scratch_operands = 0 : i64, tpu.core_type = #tpu.core_type<tc>, window_params = [{pipeline_mode = #tpu.pipeline_mode<synchronous>, transform_indices = @transform_0, window_bounds = array<i64: 1, 128>}, {pipeline_mode = #tpu.pipeline_mode<synchronous>, transform_indices = @transform_1, window_bounds = array<i64: 128, 1>}, {pipeline_mode = #tpu.pipeline_mode<synchronous>, transform_indices = @transform_2, window_bounds = array<i64: 128, 64>}, {transform_indices = @transform_3, window_bounds = array<i64: 1, 64, 64>}, {transform_indices = @transform_4, window_bounds = array<i64: 1, 64, 256>}, {transform_indices = @transform_5, window_bounds = array<i64: 1, 256, 64>}, {transform_indices = @transform_6, window_bounds = array<i64: 1, 6, 64>}, {transform_indices = @transform_7, window_bounds = array<i64: 1, 1, 256>}, {pipeline_mode = #tpu.pipeline_mode<synchronous>, transform_indices = @transform_8, window_bounds = array<i64: 128, 64>}]} {
    %c0_i32 = arith.constant 0 : i32
    %0 = arith.cmpi eq, %arg0, %c0_i32 : i32
    %1 = arith.extui %0 : i1 to i32
    %c0_i32_0 = arith.constant 0 : i32
    %2 = arith.cmpi ne, %1, %c0_i32_0 : i32
    scf.if %2 {
      %c0_51 = arith.constant 0 : index
      %c0_52 = arith.constant 0 : index
      %145 = vector.load %arg3[%c0_51, %c0_52] : memref<128x64xf32, #tpu.memory_space<vmem>>, vector<128x64xf32>
      %c0_53 = arith.constant 0 : index
      %c0_54 = arith.constant 0 : index
      %146 = vector.load %arg9[%c0_53, %c0_54] : memref<128x64xf32, #tpu.memory_space<vmem>>, vector<128x64xf32>
      tpu.vector_store %arg9[%c0_53, %c0_54], %145 {strides = array<i32>} : memref<128x64xf32, #tpu.memory_space<vmem>>, vector<128x64xf32>,
    } else {
    }
    %c0 = arith.constant 0 : index
    %c0_1 = arith.constant 0 : index
    %3 = vector.load %arg9[%c0, %c0_1] : memref<128x64xf32, #tpu.memory_space<vmem>>, vector<128x64xf32>
    %c0_2 = arith.constant 0 : index
    %c0_3 = arith.constant 0 : index
    %c0_4 = arith.constant 0 : index
    %4 = vector.load %arg7[%c0_2, %c0_3, %c0_4] : memref<1x6x64xf32, #tpu.memory_space<vmem>>, vector<1x6x64xf32>
    %5 = vector.shape_cast %4 : vector<1x6x64xf32> to vector<6x64xf32>
    %6 = vector.extract_strided_slice %5 {offsets = [0, 0], sizes = [1, 64], strides = [1, 1]} : vector<6x64xf32> to vector<1x64xf32>
    %7 = vector.extract_strided_slice %5 {offsets = [1, 0], sizes = [1, 64], strides = [1, 1]} : vector<6x64xf32> to vector<1x64xf32>
    %8 = vector.extract_strided_slice %5 {offsets = [2, 0], sizes = [1, 64], strides = [1, 1]} : vector<6x64xf32> to vector<1x64xf32>
    %9 = vector.extract_strided_slice %5 {offsets = [3, 0], sizes = [1, 64], strides = [1, 1]} : vector<6x64xf32> to vector<1x64xf32>
    %10 = vector.extract_strided_slice %5 {offsets = [4, 0], sizes = [1, 64], strides = [1, 1]} : vector<6x64xf32> to vector<1x64xf32>
    %11 = vector.extract_strided_slice %5 {offsets = [5, 0], sizes = [1, 64], strides = [1, 1]} : vector<6x64xf32> to vector<1x64xf32>
    %cst = arith.constant dense<0.000000e+00> : vector<128xf32>
    %12 = vector.multi_reduction <add>, %3, %cst [1] : vector<128x64xf32> to vector<128xf32>
    %13 = vector.shape_cast %12 : vector<128xf32> to vector<128x1xf32>
    %cst_5 = arith.constant 6.400000e+01 : f32
    %14 = vector.broadcast %cst_5 : f32 to vector<128x1xf32>
    %15 = arith.divf %13, %14 : vector<128x1xf32>
    %16 = vector.broadcast %15 : vector<128x1xf32> to vector<128x64xf32>
    %17 = arith.subf %3, %16 : vector<128x64xf32>
    %18 = arith.mulf %17, %17 : vector<128x64xf32>
    %cst_6 = arith.constant dense<0.000000e+00> : vector<128xf32>
    %19 = vector.multi_reduction <add>, %18, %cst_6 [1] : vector<128x64xf32> to vector<128xf32>
    %20 = vector.shape_cast %19 : vector<128xf32> to vector<128x1xf32>
    %cst_7 = arith.constant 6.400000e+01 : f32
    %21 = vector.broadcast %cst_7 : f32 to vector<128x1xf32>
    %22 = arith.divf %20, %21 : vector<128x1xf32>
    %23 = vector.broadcast %15 : vector<128x1xf32> to vector<128x64xf32>
    %24 = arith.subf %3, %23 : vector<128x64xf32>
    %cst_8 = arith.constant 9.99999974E-6 : f32
    %25 = vector.broadcast %cst_8 : f32 to vector<128x1xf32>
    %26 = arith.addf %22, %25 : vector<128x1xf32>
    %27 = math.rsqrt %26 : vector<128x1xf32>
    %28 = vector.broadcast %27 : vector<128x1xf32> to vector<128x64xf32>
    %29 = arith.mulf %24, %28 : vector<128x64xf32>
    %30 = vector.broadcast %6 : vector<1x64xf32> to vector<128x64xf32>
    %31 = arith.mulf %29, %30 : vector<128x64xf32>
    %32 = vector.broadcast %7 : vector<1x64xf32> to vector<128x64xf32>
    %33 = arith.addf %31, %32 : vector<128x64xf32>
    %c0_9 = arith.constant 0 : index
    %c0_10 = arith.constant 0 : index
    %34 = vector.load %arg1[%c0_9, %c0_10] : memref<1x128xi32, #tpu.memory_space<vmem>>, vector<1x128xi32>
    %35 = tpu.iota {dimensions = array<i32: 0>} : vector<4x128xi32>
    %36 = vector.broadcast %34 : vector<1x128xi32> to vector<4x128xi32>
    %37 = arith.cmpi eq, %35, %36 : vector<4x128xi32>
    %38 = arith.extui %37 : vector<4x128xi1> to vector<4x128xi32>
    %39 = arith.sitofp %38 : vector<4x128xi32> to vector<4x128xf32>
    %40 = arith.truncf %39 : vector<4x128xf32> to vector<4x128xbf16>
    %41 = arith.truncf %33 : vector<128x64xf32> to vector<128x64xbf16>
    %cst_11 = arith.constant dense<0.000000e+00> : vector<4x64xf32>
    %42 = tpu.matmul %40, %41, %cst_11 {dimension_numbers = #tpu.dot_dimension_numbers<[1], [0], [0], [1], [0, 0, 1, 1], [], []>} : vector<4x128xbf16>, vector<128x64xbf16>, vector<4x64xf32> -> vector<4x64xf32>
    %cst_12 = arith.constant dense<0.000000e+00> : vector<4xf32>
    %43 = vector.multi_reduction <add>, %39, %cst_12 [1] : vector<4x128xf32> to vector<4xf32>
    %44 = vector.shape_cast %43 : vector<4xf32> to vector<4x1xf32>
    %cst_13 = arith.constant 1.000000e+00 : f32
    %45 = vector.broadcast %cst_13 : f32 to vector<4x1xf32>
    %46 = arith.maximumf %44, %45 : vector<4x1xf32>
    %47 = tpu.reciprocal %46 {approx = true} : vector<4x1xf32> -> vector<4x1xf32>
    %48 = vector.broadcast %47 : vector<4x1xf32> to vector<4x64xf32>
    %49 = arith.mulf %42, %48 : vector<4x64xf32>
    %50 = arith.truncf %49 : vector<4x64xf32> to vector<4x64xbf16>
    %c0_14 = arith.constant 0 : index
    %c0_15 = arith.constant 0 : index
    %c0_16 = arith.constant 0 : index
    %51 = vector.load %arg4[%c0_14, %c0_15, %c0_16] : memref<1x64x64xbf16, #tpu.memory_space<vmem>>, vector<1x64x64xbf16>
    %52 = vector.shape_cast %51 : vector<1x64x64xbf16> to vector<64x64xbf16>
    %cst_17 = arith.constant dense<0.000000e+00> : vector<4x64xf32>
    %53 = tpu.matmul %50, %52, %cst_17 {dimension_numbers = #tpu.dot_dimension_numbers<[1], [0], [0], [1], [0, 0, 1, 1], [], []>} : vector<4x64xbf16>, vector<64x64xbf16>, vector<4x64xf32> -> vector<4x64xf32>
    %54 = vector.broadcast %8 : vector<1x64xf32> to vector<4x64xf32>
    %55 = arith.addf %53, %54 : vector<4x64xf32>
    %c0_18 = arith.constant 0 : index
    %c0_19 = arith.constant 0 : index
    %56 = vector.load %arg2[%c0_18, %c0_19] : memref<128x1xi32, #tpu.memory_space<vmem>>, vector<128x1xi32>
    %cst_20 = arith.constant 0.000000e+00 : f32
    %57 = vector.broadcast %cst_20 : f32 to vector<128x64xf32>
    %c0_i32_21 = arith.constant 0 : i32
    %58 = vector.broadcast %c0_i32_21 : i32 to vector<128x1xi32>
    %59 = arith.cmpi eq, %56, %58 : vector<128x1xi32>
    %cst_22 = arith.constant 1.000000e+00 : f32
    %cst_23 = arith.constant 0.000000e+00 : f32
    %60 = vector.broadcast %cst_22 : f32 to vector<128x1xf32>
    %61 = vector.broadcast %cst_23 : f32 to vector<128x1xf32>
    %62 = arith.select %59, %60, %61 : vector<128x1xi1>, vector<128x1xf32>
    %63 = vector.extract_strided_slice %55 {offsets = [0, 0], sizes = [1, 64], strides = [1, 1]} : vector<4x64xf32> to vector<1x64xf32>
    %64 = vector.broadcast %62 : vector<128x1xf32> to vector<128x64xf32>
    %65 = vector.broadcast %63 : vector<1x64xf32> to vector<128x64xf32>
    %66 = arith.mulf %64, %65 : vector<128x64xf32>
    %67 = arith.addf %57, %66 : vector<128x64xf32>
    %c1_i32 = arith.constant 1 : i32
    %68 = vector.broadcast %c1_i32 : i32 to vector<128x1xi32>
    %69 = arith.cmpi eq, %56, %68 : vector<128x1xi32>
    %cst_24 = arith.constant 1.000000e+00 : f32
    %cst_25 = arith.constant 0.000000e+00 : f32
    %70 = vector.broadcast %cst_24 : f32 to vector<128x1xf32>
    %71 = vector.broadcast %cst_25 : f32 to vector<128x1xf32>
    %72 = arith.select %69, %70, %71 : vector<128x1xi1>, vector<128x1xf32>
    %73 = vector.extract_strided_slice %55 {offsets = [1, 0], sizes = [1, 64], strides = [1, 1]} : vector<4x64xf32> to vector<1x64xf32>
    %74 = vector.broadcast %72 : vector<128x1xf32> to vector<128x64xf32>
    %75 = vector.broadcast %73 : vector<1x64xf32> to vector<128x64xf32>
    %76 = arith.mulf %74, %75 : vector<128x64xf32>
    %77 = arith.addf %67, %76 : vector<128x64xf32>
    %c2_i32 = arith.constant 2 : i32
    %78 = vector.broadcast %c2_i32 : i32 to vector<128x1xi32>
    %79 = arith.cmpi eq, %56, %78 : vector<128x1xi32>
    %cst_26 = arith.constant 1.000000e+00 : f32
    %cst_27 = arith.constant 0.000000e+00 : f32
    %80 = vector.broadcast %cst_26 : f32 to vector<128x1xf32>
    %81 = vector.broadcast %cst_27 : f32 to vector<128x1xf32>
    %82 = arith.select %79, %80, %81 : vector<128x1xi1>, vector<128x1xf32>
    %83 = vector.extract_strided_slice %55 {offsets = [2, 0], sizes = [1, 64], strides = [1, 1]} : vector<4x64xf32> to vector<1x64xf32>
    %84 = vector.broadcast %82 : vector<128x1xf32> to vector<128x64xf32>
    %85 = vector.broadcast %83 : vector<1x64xf32> to vector<128x64xf32>
    %86 = arith.mulf %84, %85 : vector<128x64xf32>
    %87 = arith.addf %77, %86 : vector<128x64xf32>
    %c3_i32 = arith.constant 3 : i32
    %88 = vector.broadcast %c3_i32 : i32 to vector<128x1xi32>
    %89 = arith.cmpi eq, %56, %88 : vector<128x1xi32>
    %cst_28 = arith.constant 1.000000e+00 : f32
    %cst_29 = arith.constant 0.000000e+00 : f32
    %90 = vector.broadcast %cst_28 : f32 to vector<128x1xf32>
    %91 = vector.broadcast %cst_29 : f32 to vector<128x1xf32>
    %92 = arith.select %89, %90, %91 : vector<128x1xi1>, vector<128x1xf32>
    %93 = vector.extract_strided_slice %55 {offsets = [3, 0], sizes = [1, 64], strides = [1, 1]} : vector<4x64xf32> to vector<1x64xf32>
    %94 = vector.broadcast %92 : vector<128x1xf32> to vector<128x64xf32>
    %95 = vector.broadcast %93 : vector<1x64xf32> to vector<128x64xf32>
    %96 = arith.mulf %94, %95 : vector<128x64xf32>
    %97 = arith.addf %87, %96 : vector<128x64xf32>
    %98 = arith.addf %3, %97 : vector<128x64xf32>
    %cst_30 = arith.constant dense<0.000000e+00> : vector<128xf32>
    %99 = vector.multi_reduction <add>, %98, %cst_30 [1] : vector<128x64xf32> to vector<128xf32>
    %100 = vector.shape_cast %99 : vector<128xf32> to vector<128x1xf32>
    %cst_31 = arith.constant 6.400000e+01 : f32
    %101 = vector.broadcast %cst_31 : f32 to vector<128x1xf32>
    %102 = arith.divf %100, %101 : vector<128x1xf32>
    %103 = vector.broadcast %102 : vector<128x1xf32> to vector<128x64xf32>
    %104 = arith.subf %98, %103 : vector<128x64xf32>
    %105 = arith.mulf %104, %104 : vector<128x64xf32>
    %cst_32 = arith.constant dense<0.000000e+00> : vector<128xf32>
    %106 = vector.multi_reduction <add>, %105, %cst_32 [1] : vector<128x64xf32> to vector<128xf32>
    %107 = vector.shape_cast %106 : vector<128xf32> to vector<128x1xf32>
    %cst_33 = arith.constant 6.400000e+01 : f32
    %108 = vector.broadcast %cst_33 : f32 to vector<128x1xf32>
    %109 = arith.divf %107, %108 : vector<128x1xf32>
    %110 = vector.broadcast %102 : vector<128x1xf32> to vector<128x64xf32>
    %111 = arith.subf %98, %110 : vector<128x64xf32>
    %cst_34 = arith.constant 9.99999974E-6 : f32
    %112 = vector.broadcast %cst_34 : f32 to vector<128x1xf32>
    %113 = arith.addf %109, %112 : vector<128x1xf32>
    %114 = math.rsqrt %113 : vector<128x1xf32>
    %115 = vector.broadcast %114 : vector<128x1xf32> to vector<128x64xf32>
    %116 = arith.mulf %111, %115 : vector<128x64xf32>
    %117 = vector.broadcast %9 : vector<1x64xf32> to vector<128x64xf32>
    %118 = arith.mulf %116, %117 : vector<128x64xf32>
    %119 = vector.broadcast %10 : vector<1x64xf32> to vector<128x64xf32>
    %120 = arith.addf %118, %119 : vector<128x64xf32>
    %121 = arith.truncf %120 : vector<128x64xf32> to vector<128x64xbf16>
    %c0_35 = arith.constant 0 : index
    %c0_36 = arith.constant 0 : index
    %c0_37 = arith.constant 0 : index
    %122 = vector.load %arg5[%c0_35, %c0_36, %c0_37] : memref<1x64x256xbf16, #tpu.memory_space<vmem>>, vector<1x64x256xbf16>
    %123 = vector.shape_cast %122 : vector<1x64x256xbf16> to vector<64x256xbf16>
    %cst_38 = arith.constant dense<0.000000e+00> : vector<128x256xf32>
    %124 = tpu.matmul %121, %123, %cst_38 {dimension_numbers = #tpu.dot_dimension_numbers<[1], [0], [0], [1], [0, 0, 1, 1], [], []>} : vector<128x64xbf16>, vector<64x256xbf16>, vector<128x256xf32> -> vector<128x256xf32>
    %c0_39 = arith.constant 0 : index
    %c0_40 = arith.constant 0 : index
    %c0_41 = arith.constant 0 : index
    %125 = vector.load %arg8[%c0_39, %c0_40, %c0_41] : memref<1x1x256xf32, #tpu.memory_space<vmem>>, vector<1x1x256xf32>
    %126 = vector.shape_cast %125 : vector<1x1x256xf32> to vector<1x256xf32>
    %127 = vector.broadcast %126 : vector<1x256xf32> to vector<128x256xf32>
    %128 = arith.addf %124, %127 : vector<128x256xf32>
    %cst_42 = arith.constant 5.000000e-01 : f32
    %129 = vector.broadcast %cst_42 : f32 to vector<128x256xf32>
    %130 = arith.mulf %129, %128 : vector<128x256xf32>
    %cst_43 = arith.constant 1.41421354 : f32
    %131 = vector.broadcast %cst_43 : f32 to vector<128x256xf32>
    %132 = arith.divf %128, %131 : vector<128x256xf32>
    %133 = math.erf %132 : vector<128x256xf32>
    %cst_44 = arith.constant 1.000000e+00 : f32
    %134 = vector.broadcast %cst_44 : f32 to vector<128x256xf32>
    %135 = arith.addf %134, %133 : vector<128x256xf32>
    %136 = arith.mulf %130, %135 : vector<128x256xf32>
    %137 = arith.truncf %136 : vector<128x256xf32> to vector<128x256xbf16>
    %c0_45 = arith.constant 0 : index
    %c0_46 = arith.constant 0 : index
    %c0_47 = arith.constant 0 : index
    %138 = vector.load %arg6[%c0_45, %c0_46, %c0_47] : memref<1x256x64xbf16, #tpu.memory_space<vmem>>, vector<1x256x64xbf16>
    %139 = vector.shape_cast %138 : vector<1x256x64xbf16> to vector<256x64xbf16>
    %cst_48 = arith.constant dense<0.000000e+00> : vector<128x64xf32>
    %140 = tpu.matmul %137, %139, %cst_48 {dimension_numbers = #tpu.dot_dimension_numbers<[1], [0], [0], [1], [0, 0, 1, 1], [], []>} : vector<128x256xbf16>, vector<256x64xbf16>, vector<128x64xf32> -> vector<128x64xf32>
    %141 = vector.broadcast %11 : vector<1x64xf32> to vector<128x64xf32>
    %142 = arith.addf %140, %141 : vector<128x64xf32>
    %143 = arith.addf %98, %142 : vector<128x64xf32>
    %c0_49 = arith.constant 0 : index
    %c0_50 = arith.constant 0 : index
    %144 = vector.load %arg9[%c0_49, %c0_50] : memref<128x64xf32, #tpu.memory_space<vmem>>, vector<128x64xf32>
    tpu.vector_store %arg9[%c0_49, %c0_50], %143 {strides = array<i32>} : memref<128x64xf32, #tpu.memory_space<vmem>>, vector<128x64xf32>,
    return
  }
  func.func @transform_0(%arg0: i32) -> (i32, i32) {
    %c0_i32 = arith.constant 0 : i32
    %c0_i32_0 = arith.constant 0 : i32
    %c0_i32_1 = arith.constant 0 : i32
    return %c0_i32, %c0_i32_0 : i32, i32
  }
  func.func @transform_1(%arg0: i32) -> (i32, i32) {
    %c0_i32 = arith.constant 0 : i32
    %c0_i32_0 = arith.constant 0 : i32
    %c0_i32_1 = arith.constant 0 : i32
    return %c0_i32, %c0_i32_0 : i32, i32
  }
  func.func @transform_2(%arg0: i32) -> (i32, i32) {
    %c0_i32 = arith.constant 0 : i32
    %c0_i32_0 = arith.constant 0 : i32
    %c0_i32_1 = arith.constant 0 : i32
    return %c0_i32, %c0_i32_0 : i32, i32
  }
  func.func @transform_3(%arg0: i32) -> (i32, i32, i32) {
    %c0_i32 = arith.constant 0 : i32
    %c0_i32_0 = arith.constant 0 : i32
    %c0_i32_1 = arith.constant 0 : i32
    return %arg0, %c0_i32, %c0_i32_0 : i32, i32, i32
  }
  func.func @transform_4(%arg0: i32) -> (i32, i32, i32) {
    %c0_i32 = arith.constant 0 : i32
    %c0_i32_0 = arith.constant 0 : i32
    %c0_i32_1 = arith.constant 0 : i32
    return %arg0, %c0_i32, %c0_i32_0 : i32, i32, i32
  }
  func.func @transform_5(%arg0: i32) -> (i32, i32, i32) {
    %c0_i32 = arith.constant 0 : i32
    %c0_i32_0 = arith.constant 0 : i32
    %c0_i32_1 = arith.constant 0 : i32
    return %arg0, %c0_i32, %c0_i32_0 : i32, i32, i32
  }
  func.func @transform_6(%arg0: i32) -> (i32, i32, i32) {
    %c0_i32 = arith.constant 0 : i32
    %c0_i32_0 = arith.constant 0 : i32
    %c0_i32_1 = arith.constant 0 : i32
    return %arg0, %c0_i32, %c0_i32_0 : i32, i32, i32
  }
  func.func @transform_7(%arg0: i32) -> (i32, i32, i32) {
    %c0_i32 = arith.constant 0 : i32
    %c0_i32_0 = arith.constant 0 : i32
    %c0_i32_1 = arith.constant 0 : i32
    return %arg0, %c0_i32, %c0_i32_0 : i32, i32, i32
  }
  func.func @transform_8(%arg0: i32) -> (i32, i32) {
    %c0_i32 = arith.constant 0 : i32
    %c0_i32_0 = arith.constant 0 : i32
    %c0_i32_1 = arith.constant 0 : i32
    return %c0_i32, %c0_i32_0 : i32, i32
  }
}

</mosaic_0001>

<llo_original>
// kernel: tpu_custom_call.1
$region0: #{tpu_custom_call.1}
  #allocation0 [shape = 'u32[]', space=smem, size = 0x4, offset = 0x4, fixed_abs, tag = 'smem constant byte address 0x4 - core index']
  #allocation1 [shape = 'u32[144,128]{1,0:T(1,128)}', space=vmem, size = 0x12000, scoped, tag = 'internal scratch']
  %s0 = inlined_call_operand.vmem [shape: s32[1,128], index: 0, kind: input, shape index: {}]
  %s1 = inlined_call_operand.vmem [shape: s32[128,1], index: 1, kind: input, shape index: {}]
  %s2 = inlined_call_operand.vmem [shape: f32[128,64], index: 2, kind: input, shape index: {}]
  %s3 = inlined_call_operand.vmem [shape: bf16[2,64,64], index: 3, kind: input, shape index: {}]
  %s4 = inlined_call_operand.vmem [shape: bf16[2,64,256], index: 4, kind: input, shape index: {}]
  %s5 = inlined_call_operand.vmem [shape: bf16[2,256,64], index: 5, kind: input, shape index: {}]
  %s6 = inlined_call_operand.vmem [shape: f32[2,6,64], index: 6, kind: input, shape index: {}]
  %s7 = inlined_call_operand.vmem [shape: f32[2,1,256], index: 7, kind: input, shape index: {}]
  %s8 = inlined_call_operand.vmem [shape: f32[128,64], index: 8, kind: output, shape index: {}]
  %s9 = sld [smem:[#allocation0]]
  $region69: #{tpu_custom_call.1} parent=0
    _
  %s11 = ssub.s32 1, %s9
  %s12 = scalar_select 0, %s11, %s9
  loop: start=0, step=1, limit=4
  $region2: #{tpu_custom_call.1} parent=0 // loop_pre_header
    _
  $region3: #{tpu_custom_call.1} parent=0 // loop_header
    %s14 = sphi 0, %s18
    %p15 = scmp.ge.s32.totalorder %s14, 4
    %s22 = sphi 0, %s22
    %s24 = sphi 0, %s22
    %s25 = sphi 0, %s24
    %s39 = sphi 0, %s25
    %s43 = sphi 0, %s43
    %s45 = sphi 0, %s43
    %s46 = sphi 0, %s45
    %s60 = sphi 0, %s46
    %s64 = sphi 0, %s64
    %s66 = sphi 0, %s64
    %s67 = sphi 0, %s66
    %s81 = sphi 0, %s67
    %s87 = sphi 0, %s89
    %s90 = sphi 0, %s87
    %s91 = sphi 0, %s90
    %s107 = sphi 0, %s91
    %s113 = sphi 0, %s115
    %s116 = sphi 0, %s113
    %s117 = sphi 0, %s116
    %s133 = sphi 0, %s117
    %s139 = sphi 0, %s141
    %s142 = sphi 0, %s139
    %s143 = sphi 0, %s142
    %s159 = sphi 0, %s143
    %s165 = sphi 0, %s167
    %s168 = sphi 0, %s165
    %s169 = sphi 0, %s168
    %s185 = sphi 0, %s169
    %s191 = sphi 0, %s193
    %s194 = sphi 0, %s191
    %s195 = sphi 0, %s194
    %s211 = sphi 0, %s195
    %s215 = sphi 0, %s215
    %s217 = sphi 0, %s215
    %s218 = sphi 0, %s217
    %s232 = sphi 0, %s218
  $region4: #{tpu_custom_call.1} parent=0 // loop_header_branch
    %17 = sbr.rel (%p15) target = $region8
  $region5: #{tpu_custom_call.1} parent=0 // loop_body
    %s19 = ssub.s32 %s14, 1
    %s20 = ssub.s32 %s14, 2
    %s21 = sadd.s32 %s14, 1
    %s23 = sadd.s32 %s22, 1
    %p26 = scmp.eq.s32.totalorder %s14, 1
    %p27 = scmp.ne.s32.totalorder %s22, %s24
    %p28 = scmp.eq.s32.totalorder %s14, 0
    %p29 = por %p27, %p28
    %p30 = scmp.ne.s32.totalorder %s22, %s24
    %p31 = scmp.eq.s32.totalorder %s19, 1
    %p32 = por %p30, %p31
    %p33 = scmp.ne.s32.totalorder %s24, %s25
    %p34 = scmp.eq.s32.totalorder %s19, 0
    %p35 = por %p33, %p34
    %p36 = scmp.ne.s32.totalorder %s24, %s25
    %p37 = scmp.eq.s32.totalorder %s20, 1
    %p38 = por %p36, %p37
    %p40 = scmp.ne.s32.totalorder %s25, %s39
    %p41 = scmp.eq.s32.totalorder %s20, 0
    %p42 = por %p40, %p41
    %s44 = sadd.s32 %s43, 1
    %p47 = scmp.eq.s32.totalorder %s14, 1
    %p48 = scmp.ne.s32.totalorder %s43, %s45
    %p49 = scmp.eq.s32.totalorder %s14, 0
    %p50 = por %p48, %p49
    %p51 = scmp.ne.s32.totalorder %s43, %s45
    %p52 = scmp.eq.s32.totalorder %s19, 1
    %p53 = por %p51, %p52
    %p54 = scmp.ne.s32.totalorder %s45, %s46
    %p55 = scmp.eq.s32.totalorder %s19, 0
    %p56 = por %p54, %p55
    %p57 = scmp.ne.s32.totalorder %s45, %s46
    %p58 = scmp.eq.s32.totalorder %s20, 1
    %p59 = por %p57, %p58
    %p61 = scmp.ne.s32.totalorder %s46, %s60
    %p62 = scmp.eq.s32.totalorder %s20, 0
    %p63 = por %p61, %p62
    %s65 = sadd.s32 %s64, 1
    %p68 = scmp.eq.s32.totalorder %s14, 1
    %p69 = scmp.ne.s32.totalorder %s64, %s66
    %p70 = scmp.eq.s32.totalorder %s14, 0
    %p71 = por %p69, %p70
    %p72 = scmp.ne.s32.totalorder %s64, %s66
    %p73 = scmp.eq.s32.totalorder %s19, 1
    %p74 = por %p72, %p73
    %p75 = scmp.ne.s32.totalorder %s66, %s67
    %p76 = scmp.eq.s32.totalorder %s19, 0
    %p77 = por %p75, %p76
    %p78 = scmp.ne.s32.totalorder %s66, %s67
    %p79 = scmp.eq.s32.totalorder %s20, 1
    %p80 = por %p78, %p79
    %p82 = scmp.ne.s32.totalorder %s67, %s81
    %p83 = scmp.eq.s32.totalorder %s20, 0
    %p84 = por %p82, %p83
    %s85 = ssub.s32 %s14, %s21
    %p86 = scmp.eq.s32.totalorder %s85, 0
    %s88 = sadd.s32 %s87, 1
    %s89 = scalar_select %p86, %s87, %s88
    %p92 = pneg %p86
    %p93 = scmp.eq.s32.totalorder %s14, 1
    %p94 = por %p92, %p93
    %p95 = scmp.ne.s32.totalorder %s87, %s90
    %p96 = scmp.eq.s32.totalorder %s14, 0
    %p97 = por %p95, %p96
    %p98 = scmp.ne.s32.totalorder %s87, %s90
    %p99 = scmp.eq.s32.totalorder %s19, 1
    %p100 = por %p98, %p99
    %p101 = scmp.ne.s32.totalorder %s90, %s91
    %p102 = scmp.eq.s32.totalorder %s19, 0
    %p103 = por %p101, %p102
    %p104 = scmp.ne.s32.totalorder %s90, %s91
    %p105 = scmp.eq.s32.totalorder %s20, 1
    %p106 = por %p104, %p105
    %p108 = scmp.ne.s32.totalorder %s91, %s107
    %p109 = scmp.eq.s32.totalorder %s20, 0
    %p110 = por %p108, %p109
    %s111 = ssub.s32 %s14, %s21
    %p112 = scmp.eq.s32.totalorder %s111, 0
    %s114 = sadd.s32 %s113, 1
    %s115 = scalar_select %p112, %s113, %s114
    %p118 = pneg %p112
    %p119 = scmp.eq.s32.totalorder %s14, 1
    %p120 = por %p118, %p119
    %p121 = scmp.ne.s32.totalorder %s113, %s116
    %p122 = scmp.eq.s32.totalorder %s14, 0
    %p123 = por %p121, %p122
    %p124 = scmp.ne.s32.totalorder %s113, %s116
    %p125 = scmp.eq.s32.totalorder %s19, 1
    %p126 = por %p124, %p125
    %p127 = scmp.ne.s32.totalorder %s116, %s117
    %p128 = scmp.eq.s32.totalorder %s19, 0
    %p129 = por %p127, %p128
    %p130 = scmp.ne.s32.totalorder %s116, %s117
    %p131 = scmp.eq.s32.totalorder %s20, 1
    %p132 = por %p130, %p131
    %p134 = scmp.ne.s32.totalorder %s117, %s133
    %p135 = scmp.eq.s32.totalorder %s20, 0
    %p136 = por %p134, %p135
    %s137 = ssub.s32 %s14, %s21
    %p138 = scmp.eq.s32.totalorder %s137, 0
    %s140 = sadd.s32 %s139, 1
    %s141 = scalar_select %p138, %s139, %s140
    %p144 = pneg %p138
    %p145 = scmp.eq.s32.totalorder %s14, 1
    %p146 = por %p144, %p145
    %p147 = scmp.ne.s32.totalorder %s139, %s142
    %p148 = scmp.eq.s32.totalorder %s14, 0
    %p149 = por %p147, %p148
    %p150 = scmp.ne.s32.totalorder %s139, %s142
    %p151 = scmp.eq.s32.totalorder %s19, 1
    %p152 = por %p150, %p151
    %p153 = scmp.ne.s32.totalorder %s142, %s143
    %p154 = scmp.eq.s32.totalorder %s19, 0
    %p155 = por %p153, %p154
    %p156 = scmp.ne.s32.totalorder %s142, %s143
    %p157 = scmp.eq.s32.totalorder %s20, 1
    %p158 = por %p156, %p157
    %p160 = scmp.ne.s32.totalorder %s143, %s159
    %p161 = scmp.eq.s32.totalorder %s20, 0
    %p162 = por %p160, %p161
    %s163 = ssub.s32 %s14, %s21
    %p164 = scmp.eq.s32.totalorder %s163, 0
    %s166 = sadd.s32 %s165, 1
    %s167 = scalar_select %p164, %s165, %s166
    %p170 = pneg %p164
    %p171 = scmp.eq.s32.totalorder %s14, 1
    %p172 = por %p170, %p171
    %p173 = scmp.ne.s32.totalorder %s165, %s168
    %p174 = scmp.eq.s32.totalorder %s14, 0
    %p175 = por %p173, %p174
    %p176 = scmp.ne.s32.totalorder %s165, %s168
    %p177 = scmp.eq.s32.totalorder %s19, 1
    %p178 = por %p176, %p177
    %p179 = scmp.ne.s32.totalorder %s168, %s169
    %p180 = scmp.eq.s32.totalorder %s19, 0
    %p181 = por %p179, %p180
    %p182 = scmp.ne.s32.totalorder %s168, %s169
    %p183 = scmp.eq.s32.totalorder %s20, 1
    %p184 = por %p182, %p183
    %p186 = scmp.ne.s32.totalorder %s169, %s185
    %p187 = scmp.eq.s32.totalorder %s20, 0
    %p188 = por %p186, %p187
    %s189 = ssub.s32 %s14, %s21
    %p190 = scmp.eq.s32.totalorder %s189, 0
    %s192 = sadd.s32 %s191, 1
    %s193 = scalar_select %p190, %s191, %s192
    %p196 = pneg %p190
    %p197 = scmp.eq.s32.totalorder %s14, 1
    %p198 = por %p196, %p197
    %p199 = scmp.ne.s32.totalorder %s191, %s194
    %p200 = scmp.eq.s32.totalorder %s14, 0
    %p201 = por %p199, %p200
    %p202 = scmp.ne.s32.totalorder %s191, %s194
    %p203 = scmp.eq.s32.totalorder %s19, 1
    %p204 = por %p202, %p203
    %p205 = scmp.ne.s32.totalorder %s194, %s195
    %p206 = scmp.eq.s32.totalorder %s19, 0
    %p207 = por %p205, %p206
    %p208 = scmp.ne.s32.totalorder %s194, %s195
    %p209 = scmp.eq.s32.totalorder %s20, 1
    %p210 = por %p208, %p209
    %p212 = scmp.ne.s32.totalorder %s195, %s211
    %p213 = scmp.eq.s32.totalorder %s20, 0
    %p214 = por %p212, %p213
    %s216 = sadd.s32 %s215, 1
    %p219 = scmp.eq.s32.totalorder %s14, 1
    %p220 = scmp.ne.s32.totalorder %s215, %s217
    %p221 = scmp.eq.s32.totalorder %s14, 0
    %p222 = por %p220, %p221
    %p223 = scmp.ne.s32.totalorder %s215, %s217
    %p224 = scmp.eq.s32.totalorder %s19, 1
    %p225 = por %p223, %p224
    %p226 = scmp.ne.s32.totalorder %s217, %s218
    %p227 = scmp.eq.s32.totalorder %s19, 0
    %p228 = por %p226, %p227
    %p229 = scmp.ne.s32.totalorder %s217, %s218
    %p230 = scmp.eq.s32.totalorder %s20, 1
    %p231 = por %p229, %p230
    %p233 = scmp.ne.s32.totalorder %s218, %s232
    %p234 = scmp.eq.s32.totalorder %s20, 0
    %p235 = por %p233, %p234
    %p236 = scmp.le.s32.totalorder 1, %s14
    %p237 = scmp.lt.s32.totalorder %s14, 3
    %p238 = pnand %p236, %p237
    %p239 = pneg %p238
    // Predicated region
    $region9: #{tpu_custom_call.1} parent=5 // pred_check
      _
    $region10: #{tpu_custom_call.1} parent=5 // pred_check_branch
      %241 = sbr.rel (%p238) target = $region12
    $region11: #{tpu_custom_call.1} parent=5 // pred_region
      %s242 = ssub.s32 %s14, 1
      // Predicated region
      $region13: #{tpu_custom_call.1} parent=11 // pred_check
        %p243 = pneg %p35
      $region14: #{tpu_custom_call.1} parent=11 // pred_check_branch
        %245 = sbr.rel (%p243) target = $region16
      $region15: #{tpu_custom_call.1} parent=11 // pred_region
        _
      $region16: #{tpu_custom_call.1} parent=11 // pred_fallthru
        _
      // Predicated region
      $region17: #{tpu_custom_call.1} parent=11 // pred_check
        %p246 = pneg %p56
      $region18: #{tpu_custom_call.1} parent=11 // pred_check_branch
        %248 = sbr.rel (%p246) target = $region20
      $region19: #{tpu_custom_call.1} parent=11 // pred_region
        _
      $region20: #{tpu_custom_call.1} parent=11 // pred_fallthru
        _
      // Predicated region
      $region21: #{tpu_custom_call.1} parent=11 // pred_check
        %p249 = pneg %p77
      $region22: #{tpu_custom_call.1} parent=11 // pred_check_branch
        %251 = sbr.rel (%p249) target = $region24
      $region23: #{tpu_custom_call.1} parent=11 // pred_region
        _
      $region24: #{tpu_custom_call.1} parent=11 // pred_fallthru
        _
    $region12: #{tpu_custom_call.1} parent=5 // pred_fallthru
      _
    %p252 = scmp.lt.s32.totalorder %s14, 2
    // Predicated region
    $region25: #{tpu_custom_call.1} parent=5 // pred_check
      %p253 = pneg %p252
    $region26: #{tpu_custom_call.1} parent=5 // pred_check_branch
      %255 = sbr.rel (%p253) target = $region28
    $region27: #{tpu_custom_call.1} parent=5 // pred_region
      // Predicated region
      $region29: #{tpu_custom_call.1} parent=27 // pred_check
        %p256 = pneg %p97
      $region30: #{tpu_custom_call.1} parent=27 // pred_check_branch
        %258 = sbr.rel (%p256) target = $region32
      $region31: #{tpu_custom_call.1} parent=27 // pred_region
        %p259 = scmp.lt.s32.totalorder %s14, 1
        %s260 = scalar_select %p259, %s14, 1
        %s261 = smul.addr %s260, 8
        %s262 = smul.addr %s261, 4
        %s263 = scalar_lea.vmem %s3, %s262
      $region32: #{tpu_custom_call.1} parent=27 // pred_fallthru
        _
      // Predicated region
      $region33: #{tpu_custom_call.1} parent=27 // pred_check
        %p264 = pneg %p123
      $region34: #{tpu_custom_call.1} parent=27 // pred_check_branch
        %266 = sbr.rel (%p264) target = $region36
      $region35: #{tpu_custom_call.1} parent=27 // pred_region
        %p267 = scmp.lt.s32.totalorder %s14, 1
        %s268 = scalar_select %p267, %s14, 1
        %s269 = smul.addr %s268, 16
        %s270 = smul.addr %s269, 4
        %s271 = scalar_lea.vmem %s4, %s270
      $region36: #{tpu_custom_call.1} parent=27 // pred_fallthru
        _
      // Predicated region
      $region37: #{tpu_custom_call.1} parent=27 // pred_check
        %p272 = pneg %p149
      $region38: #{tpu_custom_call.1} parent=27 // pred_check_branch
        %274 = sbr.rel (%p272) target = $region40
      $region39: #{tpu_custom_call.1} parent=27 // pred_region
        %p275 = scmp.lt.s32.totalorder %s14, 1
        %s276 = scalar_select %p275, %s14, 1
        %s277 = smul.addr %s276, 32
        %s278 = smul.addr %s277, 4
        %s279 = scalar_lea.vmem %s5, %s278
      $region40: #{tpu_custom_call.1} parent=27 // pred_fallthru
        _
      // Predicated region
      $region41: #{tpu_custom_call.1} parent=27 // pred_check
        %p280 = pneg %p175
      $region42: #{tpu_custom_call.1} parent=27 // pred_check_branch
        %282 = sbr.rel (%p280) target = $region44
      $region43: #{tpu_custom_call.1} parent=27 // pred_region
        %p283 = scmp.lt.s32.totalorder %s14, 1
        %s284 = scalar_select %p283, %s14, 1
        %s285 = smul.addr %s284, 8
        %s286 = scalar_lea.vmem %s6, %s285
      $region44: #{tpu_custom_call.1} parent=27 // pred_fallthru
        _
      // Predicated region
      $region45: #{tpu_custom_call.1} parent=27 // pred_check
        %p287 = pneg %p201
      $region46: #{tpu_custom_call.1} parent=27 // pred_check_branch
        %289 = sbr.rel (%p287) target = $region48
      $region47: #{tpu_custom_call.1} parent=27 // pred_region
        %p290 = scmp.lt.s32.totalorder %s14, 1
        %s291 = scalar_select %p290, %s14, 1
        %s292 = smul.addr %s291, 2
        %s293 = scalar_lea.vmem %s7, %s292
      $region48: #{tpu_custom_call.1} parent=27 // pred_fallthru
        _
    $region28: #{tpu_custom_call.1} parent=5 // pred_fallthru
      _
    %p294 = scmp.le.s32.totalorder 1, %s14
    %p295 = scmp.lt.s32.totalorder %s14, 3
    %p296 = pnand %p294, %p295
    %p297 = pneg %p296
    // Predicated region
    $region49: #{tpu_custom_call.1} parent=5 // pred_check
      _
    $region50: #{tpu_custom_call.1} parent=5 // pred_check_branch
      %299 = sbr.rel (%p296) target = $region52
    $region51: #{tpu_custom_call.1} parent=5 // pred_region
      %s300 = ssub.s32 %s14, 1
      %p301 = pneg %p35
      %p302 = pneg %p32
      %p303 = pneg %p56
      %p304 = pneg %p53
      %p305 = pneg %p77
      %p306 = pneg %p74
      %p307 = scmp.lt.s32.totalorder %s19, 1
      %s308 = scalar_select %p307, %s19, 1
      %s309 = smul.addr %s308, 8
      %s310 = smul.addr %s309, 4
      %s311 = scalar_lea.vmem %s3, %s310
      %p312 = pneg %p103
      %p313 = pneg %p100
      %p314 = scmp.lt.s32.totalorder %s19, 1
      %s315 = scalar_select %p314, %s19, 1
      %s316 = smul.addr %s315, 16
      %s317 = smul.addr %s316, 4
      %s318 = scalar_lea.vmem %s4, %s317
      %p319 = pneg %p129
      %p320 = pneg %p126
      %p321 = scmp.lt.s32.totalorder %s19, 1
      %s322 = scalar_select %p321, %s19, 1
      %s323 = smul.addr %s322, 32
      %s324 = smul.addr %s323, 4
      %s325 = scalar_lea.vmem %s5, %s324
      %p326 = pneg %p155
      %p327 = pneg %p152
      %p328 = scmp.lt.s32.totalorder %s19, 1
      %s329 = scalar_select %p328, %s19, 1
      %s330 = smul.addr %s329, 8
      %s331 = scalar_lea.vmem %s6, %s330
      %p332 = pneg %p181
      %p333 = pneg %p178
      %p334 = scmp.lt.s32.totalorder %s19, 1
      %s335 = scalar_select %p334, %s19, 1
      %s336 = smul.addr %s335, 2
      %s337 = scalar_lea.vmem %s7, %s336
      %p338 = pneg %p207
      %p339 = pneg %p204
      %p340 = pneg %p228
      %p341 = pneg %p225
      %p342 = scmp.lt.s32.totalorder %s19, 1
      %s343 = scalar_select %p342, %s19, 1
      %s344 = smul.addr %s343, 8
      %s345 = smul.addr %s344, 4
      %s346 = scalar_lea.vmem %s3, %s345
      %p347 = scmp.lt.s32.totalorder %s19, 1
      %s348 = scalar_select %p347, %s19, 1
      %s349 = smul.addr %s348, 16
      %s350 = smul.addr %s349, 4
      %s351 = scalar_lea.vmem %s4, %s350
      %p352 = scmp.lt.s32.totalorder %s19, 1
      %s353 = scalar_select %p352, %s19, 1
      %s354 = smul.addr %s353, 32
      %s355 = smul.addr %s354, 4
      %s356 = scalar_lea.vmem %s5, %s355
      %p357 = scmp.lt.s32.totalorder %s19, 1
      %s358 = scalar_select %p357, %s19, 1
      %s359 = smul.addr %s358, 8
      %s360 = scalar_lea.vmem %s6, %s359
      %p361 = scmp.lt.s32.totalorder %s19, 1
      %s362 = scalar_select %p361, %s19, 1
      %s363 = smul.addr %s362, 2
      %s364 = scalar_lea.vmem %s7, %s363
      %p366 = scmp.eq.s32.totalorder %s19, 0
      // Predicated region
      $region53: #{tpu_custom_call.1} parent=51 // pred_check
        %p367 = pneg %p366
      $region54: #{tpu_custom_call.1} parent=51 // pred_check_branch
        %369 = sbr.rel (%p367) target = $region56
      $region55: #{tpu_custom_call.1} parent=51 // pred_region
        %v370 = vld [vmem:[%s2] sm:$0xff]
        %v371 = vld [vmem:[%s2 + $0x8] sm:$0xff]
        %v372 = vld [vmem:[%s2 + $0x10] sm:$0xff]
        %v373 = vld [vmem:[%s2 + $0x18] sm:$0xff]
        %v374 = vld [vmem:[%s2 + $0x20] sm:$0xff]
        %v375 = vld [vmem:[%s2 + $0x28] sm:$0xff]
        %v376 = vld [vmem:[%s2 + $0x30] sm:$0xff]
        %v377 = vld [vmem:[%s2 + $0x38] sm:$0xff]
        %v378 = vld [vmem:[%s2 + $0x40] sm:$0xff]
        %v379 = vld [vmem:[%s2 + $0x48] sm:$0xff]
        %v380 = vld [vmem:[%s2 + $0x50] sm:$0xff]
        %v381 = vld [vmem:[%s2 + $0x58] sm:$0xff]
        %v382 = vld [vmem:[%s2 + $0x60] sm:$0xff]
        %v383 = vld [vmem:[%s2 + $0x68] sm:$0xff]
        %v384 = vld [vmem:[%s2 + $0x70] sm:$0xff]
        %v385 = vld [vmem:[%s2 + $0x78] sm:$0xff]
        %vm386 = vcmask 523264
        %387 = vst.msk [vmem:[%s8] sm:$0xff] %vm386, %v370
        %388 = vst.msk [vmem:[%s8 + $0x8] sm:$0xff] %vm386, %v371
        %389 = vst.msk [vmem:[%s8 + $0x10] sm:$0xff] %vm386, %v372
        %390 = vst.msk [vmem:[%s8 + $0x18] sm:$0xff] %vm386, %v373
        %391 = vst.msk [vmem:[%s8 + $0x20] sm:$0xff] %vm386, %v374
        %392 = vst.msk [vmem:[%s8 + $0x28] sm:$0xff] %vm386, %v375
        %393 = vst.msk [vmem:[%s8 + $0x30] sm:$0xff] %vm386, %v376
        %394 = vst.msk [vmem:[%s8 + $0x38] sm:$0xff] %vm386, %v377
        %395 = vst.msk [vmem:[%s8 + $0x40] sm:$0xff] %vm386, %v378
        %396 = vst.msk [vmem:[%s8 + $0x48] sm:$0xff] %vm386, %v379
        %397 = vst.msk [vmem:[%s8 + $0x50] sm:$0xff] %vm386, %v380
        %398 = vst.msk [vmem:[%s8 + $0x58] sm:$0xff] %vm386, %v381
        %399 = vst.msk [vmem:[%s8 + $0x60] sm:$0xff] %vm386, %v382
        %400 = vst.msk [vmem:[%s8 + $0x68] sm:$0xff] %vm386, %v383
        %401 = vst.msk [vmem:[%s8 + $0x70] sm:$0xff] %vm386, %v384
        %402 = vst.msk [vmem:[%s8 + $0x78] sm:$0xff] %vm386, %v385
      $region56: #{tpu_custom_call.1} parent=51 // pred_fallthru
        _
      %v403 = vld [vmem:[%s8] sm:$0xff]
      %v404 = vld [vmem:[%s8 + $0x8] sm:$0xff]
      %v405 = vld [vmem:[%s8 + $0x10] sm:$0xff]
      %v406 = vld [vmem:[%s8 + $0x18] sm:$0xff]
      %v407 = vld [vmem:[%s8 + $0x20] sm:$0xff]
      %v408 = vld [vmem:[%s8 + $0x28] sm:$0xff]
      %v409 = vld [vmem:[%s8 + $0x30] sm:$0xff]
      %v410 = vld [vmem:[%s8 + $0x38] sm:$0xff]
      %v411 = vld [vmem:[%s8 + $0x40] sm:$0xff]
      %v412 = vld [vmem:[%s8 + $0x48] sm:$0xff]
      %v413 = vld [vmem:[%s8 + $0x50] sm:$0xff]
      %v414 = vld [vmem:[%s8 + $0x58] sm:$0xff]
      %v415 = vld [vmem:[%s8 + $0x60] sm:$0xff]
      %v416 = vld [vmem:[%s8 + $0x68] sm:$0xff]
      %v417 = vld [vmem:[%s8 + $0x70] sm:$0xff]
      %v418 = vld [vmem:[%s8 + $0x78] sm:$0xff]
      %v419 = vld [vmem:[%s360] sm:$0x3f]
      %vm420 = vcmask 523264
      %v421 = vsel %vm420, %v403, 0.0
      %422 = vadd.xlane.f32.xlu0 %v421
      %v423 = vpop.xlane.xlu0 %422
      %v424 = vsel %vm420, %v404, 0.0
      %425 = vadd.xlane.f32.xlu0 %v424
      %v426 = vpop.xlane.xlu0 %425
      %v427 = vsel %vm420, %v405, 0.0
      %428 = vadd.xlane.f32.xlu0 %v427
      %v429 = vpop.xlane.xlu0 %428
      %v430 = vsel %vm420, %v406, 0.0
      %431 = vadd.xlane.f32.xlu0 %v430
      %v432 = vpop.xlane.xlu0 %431
      %v433 = vsel %vm420, %v407, 0.0
      %434 = vadd.xlane.f32.xlu0 %v433
      %v435 = vpop.xlane.xlu0 %434
      %v436 = vsel %vm420, %v408, 0.0
      %437 = vadd.xlane.f32.xlu0 %v436
      %v438 = vpop.xlane.xlu0 %437
      %v439 = vsel %vm420, %v409, 0.0
      %440 = vadd.xlane.f32.xlu0 %v439
      %v441 = vpop.xlane.xlu0 %440
      %v442 = vsel %vm420, %v410, 0.0
      %443 = vadd.xlane.f32.xlu0 %v442
      %v444 = vpop.xlane.xlu0 %443
      %v445 = vsel %vm420, %v411, 0.0
      %446 = vadd.xlane.f32.xlu0 %v445
      %v447 = vpop.xlane.xlu0 %446
      %v448 = vsel %vm420, %v412, 0.0
      %449 = vadd.xlane.f32.xlu0 %v448
      %v450 = vpop.xlane.xlu0 %449
      %v451 = vsel %vm420, %v413, 0.0
      %452 = vadd.xlane.f32.xlu0 %v451
      %v453 = vpop.xlane.xlu0 %452
      %v454 = vsel %vm420, %v414, 0.0
      %455 = vadd.xlane.f32.xlu0 %v454
      %v456 = vpop.xlane.xlu0 %455
      %v457 = vsel %vm420, %v415, 0.0
      %458 = vadd.xlane.f32.xlu0 %v457
      %v459 = vpop.xlane.xlu0 %458
      %v460 = vsel %vm420, %v416, 0.0
      %461 = vadd.xlane.f32.xlu0 %v460
      %v462 = vpop.xlane.xlu0 %461
      %v463 = vsel %vm420, %v417, 0.0
      %464 = vadd.xlane.f32.xlu0 %v463
      %v465 = vpop.xlane.xlu0 %464
      %v466 = vsel %vm420, %v418, 0.0
      %467 = vadd.xlane.f32.xlu0 %v466
      %v468 = vpop.xlane.xlu0 %467
      %v469 = vrcp.pop 64.0
      %v470 = vmul.f32 %v423, %v469
      %v471 = vmul.f32 %v426, %v469
      %v472 = vmul.f32 %v429, %v469
      %v473 = vmul.f32 %v432, %v469
      %v474 = vmul.f32 %v435, %v469
      %v475 = vmul.f32 %v438, %v469
      %v476 = vmul.f32 %v441, %v469
      %v477 = vmul.f32 %v444, %v469
      %v478 = vmul.f32 %v447, %v469
      %v479 = vmul.f32 %v450, %v469
      %v480 = vmul.f32 %v453, %v469
      %v481 = vmul.f32 %v456, %v469
      %v482 = vmul.f32 %v459, %v469
      %v483 = vmul.f32 %v462, %v469
      %v484 = vmul.f32 %v465, %v469
      %v485 = vmul.f32 %v468, %v469
      %v486 = vsub.f32 %v403, %v470
      %v487 = vsub.f32 %v404, %v471
      %v488 = vsub.f32 %v405, %v472
      %v489 = vsub.f32 %v406, %v473
      %v490 = vsub.f32 %v407, %v474
      %v491 = vsub.f32 %v408, %v475
      %v492 = vsub.f32 %v409, %v476
      %v493 = vsub.f32 %v410, %v477
      %v494 = vsub.f32 %v411, %v478
      %v495 = vsub.f32 %v412, %v479
      %v496 = vsub.f32 %v413, %v480
      %v497 = vsub.f32 %v414, %v481
      %v498 = vsub.f32 %v415, %v482
      %v499 = vsub.f32 %v416, %v483
      %v500 = vsub.f32 %v417, %v484
      %v501 = vsub.f32 %v418, %v485
      %v502 = vmul.f32 %v486, %v486
      %v503 = vmul.f32 %v487, %v487
      %v504 = vmul.f32 %v488, %v488
      %v505 = vmul.f32 %v489, %v489
      %v506 = vmul.f32 %v490, %v490
      %v507 = vmul.f32 %v491, %v491
      %v508 = vmul.f32 %v492, %v492
      %v509 = vmul.f32 %v493, %v493
      %v510 = vmul.f32 %v494, %v494
      %v511 = vmul.f32 %v495, %v495
      %v512 = vmul.f32 %v496, %v496
      %v513 = vmul.f32 %v497, %v497
      %v514 = vmul.f32 %v498, %v498
      %v515 = vmul.f32 %v499, %v499
      %v516 = vmul.f32 %v500, %v500
      %v517 = vmul.f32 %v501, %v501
      %v518 = vsel %vm420, %v502, 0.0
      %519 = vadd.xlane.f32.xlu0 %v518
      %v520 = vpop.xlane.xlu0 %519
      %v521 = vsel %vm420, %v503, 0.0
      %522 = vadd.xlane.f32.xlu0 %v521
      %v523 = vpop.xlane.xlu0 %522
      %v524 = vsel %vm420, %v504, 0.0
      %525 = vadd.xlane.f32.xlu0 %v524
      %v526 = vpop.xlane.xlu0 %525
      %v527 = vsel %vm420, %v505, 0.0
      %528 = vadd.xlane.f32.xlu0 %v527
      %v529 = vpop.xlane.xlu0 %528
      %v530 = vsel %vm420, %v506, 0.0
      %531 = vadd.xlane.f32.xlu0 %v530
      %v532 = vpop.xlane.xlu0 %531
      %v533 = vsel %vm420, %v507, 0.0
      %534 = vadd.xlane.f32.xlu0 %v533
      %v535 = vpop.xlane.xlu0 %534
      %v536 = vsel %vm420, %v508, 0.0
      %537 = vadd.xlane.f32.xlu0 %v536
      %v538 = vpop.xlane.xlu0 %537
      %v539 = vsel %vm420, %v509, 0.0
      %540 = vadd.xlane.f32.xlu0 %v539
      %v541 = vpop.xlane.xlu0 %540
      %v542 = vsel %vm420, %v510, 0.0
      %543 = vadd.xlane.f32.xlu0 %v542
      %v544 = vpop.xlane.xlu0 %543
      %v545 = vsel %vm420, %v511, 0.0
      %546 = vadd.xlane.f32.xlu0 %v545
      %v547 = vpop.xlane.xlu0 %546
      %v548 = vsel %vm420, %v512, 0.0
      %549 = vadd.xlane.f32.xlu0 %v548
      %v550 = vpop.xlane.xlu0 %549
      %v551 = vsel %vm420, %v513, 0.0
      %552 = vadd.xlane.f32.xlu0 %v551
      %v553 = vpop.xlane.xlu0 %552
      %v554 = vsel %vm420, %v514, 0.0
      %555 = vadd.xlane.f32.xlu0 %v554
      %v556 = vpop.xlane.xlu0 %555
      %v557 = vsel %vm420, %v515, 0.0
      %558 = vadd.xlane.f32.xlu0 %v557
      %v559 = vpop.xlane.xlu0 %558
      %v560 = vsel %vm420, %v516, 0.0
      %561 = vadd.xlane.f32.xlu0 %v560
      %v562 = vpop.xlane.xlu0 %561
      %v563 = vsel %vm420, %v517, 0.0
      %564 = vadd.xlane.f32.xlu0 %v563
      %v565 = vpop.xlane.xlu0 %564
      %v566 = vmul.f32 %v520, %v469
      %v567 = vmul.f32 %v523, %v469
      %v568 = vmul.f32 %v526, %v469
      %v569 = vmul.f32 %v529, %v469
      %v570 = vmul.f32 %v532, %v469
      %v571 = vmul.f32 %v535, %v469
      %v572 = vmul.f32 %v538, %v469
      %v573 = vmul.f32 %v541, %v469
      %v574 = vmul.f32 %v544, %v469
      %v575 = vmul.f32 %v547, %v469
      %v576 = vmul.f32 %v550, %v469
      %v577 = vmul.f32 %v553, %v469
      %v578 = vmul.f32 %v556, %v469
      %v579 = vmul.f32 %v559, %v469
      %v580 = vmul.f32 %v562, %v469
      %v581 = vmul.f32 %v565, %v469
      %v582 = vadd.f32 %v566, 1e-05
      %v583 = vadd.f32 %v567, 1e-05
      %v584 = vadd.f32 %v568, 1e-05
      %v585 = vadd.f32 %v569, 1e-05
      %v586 = vadd.f32 %v570, 1e-05
      %v587 = vadd.f32 %v571, 1e-05
      %v588 = vadd.f32 %v572, 1e-05
      %v589 = vadd.f32 %v573, 1e-05
      %v590 = vadd.f32 %v574, 1e-05
      %v591 = vadd.f32 %v575, 1e-05
      %v592 = vadd.f32 %v576, 1e-05
      %v593 = vadd.f32 %v577, 1e-05
      %v594 = vadd.f32 %v578, 1e-05
      %v595 = vadd.f32 %v579, 1e-05
      %v596 = vadd.f32 %v580, 1e-05
      %v597 = vadd.f32 %v581, 1e-05
      %v598 = vrsqrt.pop %v582
      %v599 = vrsqrt.pop %v583
      %v600 = vrsqrt.pop %v584
      %v601 = vrsqrt.pop %v585
      %v602 = vrsqrt.pop %v586
      %v603 = vrsqrt.pop %v587
      %v604 = vrsqrt.pop %v588
      %v605 = vrsqrt.pop %v589
      %v606 = vrsqrt.pop %v590
      %v607 = vrsqrt.pop %v591
      %v608 = vrsqrt.pop %v592
      %v609 = vrsqrt.pop %v593
      %v610 = vrsqrt.pop %v594
      %v611 = vrsqrt.pop %v595
      %v612 = vrsqrt.pop %v596
      %v613 = vrsqrt.pop %v597
      %v614 = vmul.f32 %v486, %v598
      %v615 = vmul.f32 %v487, %v599
      %v616 = vmul.f32 %v488, %v600
      %v617 = vmul.f32 %v489, %v601
      %v618 = vmul.f32 %v490, %v602
      %v619 = vmul.f32 %v491, %v603
      %v620 = vmul.f32 %v492, %v604
      %v621 = vmul.f32 %v493, %v605
      %v622 = vmul.f32 %v494, %v606
      %v623 = vmul.f32 %v495, %v607
      %v624 = vmul.f32 %v496, %v608
      %v625 = vmul.f32 %v497, %v609
      %v626 = vmul.f32 %v498, %v610
      %v627 = vmul.f32 %v499, %v611
      %v628 = vmul.f32 %v500, %v612
      %v629 = vmul.f32 %v501, %v613
      %v630 = vlaneseq
      %v631 = vshrl.u32 %v630, 7
      %v632 = vsub.s32 0, %v631
      %v633 = vrot.slane %v419, %v632
      %v634 = vmul.f32 %v614, %v633
      %v635 = vmul.f32 %v615, %v633
      %v636 = vmul.f32 %v616, %v633
      %v637 = vmul.f32 %v617, %v633
      %v638 = vmul.f32 %v618, %v633
      %v639 = vmul.f32 %v619, %v633
      %v640 = vmul.f32 %v620, %v633
      %v641 = vmul.f32 %v621, %v633
      %v642 = vmul.f32 %v622, %v633
      %v643 = vmul.f32 %v623, %v633
      %v644 = vmul.f32 %v624, %v633
      %v645 = vmul.f32 %v625, %v633
      %v646 = vmul.f32 %v626, %v633
      %v647 = vmul.f32 %v627, %v633
      %v648 = vmul.f32 %v628, %v633
      %v649 = vmul.f32 %v629, %v633
      %v650 = vlaneseq
      %v651 = vshrl.u32 %v650, 7
      %v652 = vsub.s32 1, %v651
      %v653 = vrot.slane %v419, %v652
      %v654 = vadd.f32 %v634, %v653
      %v655 = vadd.f32 %v635, %v653
      %v656 = vadd.f32 %v636, %v653
      %v657 = vadd.f32 %v637, %v653
      %v658 = vadd.f32 %v638, %v653
      %v659 = vadd.f32 %v639, %v653
      %v660 = vadd.f32 %v640, %v653
      %v661 = vadd.f32 %v641, %v653
      %v662 = vadd.f32 %v642, %v653
      %v663 = vadd.f32 %v643, %v653
      %v664 = vadd.f32 %v644, %v653
      %v665 = vadd.f32 %v645, %v653
      %v666 = vadd.f32 %v646, %v653
      %v667 = vadd.f32 %v647, %v653
      %v668 = vadd.f32 %v648, %v653
      %v669 = vadd.f32 %v649, %v653
      %v670 = vld [vmem:[%s0] sm:$0x1]
      %v671 = vlaneseq
      %v672 = vshrl.u32 %v671, 7
      %v673 = vlaneseq
      %v674 = vshrl.u32 %v673, 7
      %v675 = vsub.s32 0, %v674
      %v676 = vrot.slane %v670, %v675
      %vm677 = vcmp.eq.s32.totalorder %v672, %v676
      %v678 = vsel %vm677, 1, 0
      %v679 = vcvt.s32.f32 %v678
      %v680 = vpack.c.bf16 %v679, %v679
      %v681 = vpack.c.bf16 %v655, %v654
      %v682 = vpack.c.bf16 %v657, %v656
      %v683 = vpack.c.bf16 %v659, %v658
      %v684 = vpack.c.bf16 %v661, %v660
      %v685 = vpack.c.bf16 %v663, %v662
      %v686 = vpack.c.bf16 %v665, %v664
      %v687 = vpack.c.bf16 %v667, %v666
      %v688 = vpack.c.bf16 %v669, %v668
      %689 = vmatprep.subr.bf16.mxu0 0
      %690 = vmatpush1.bf16.msra.mxu0 %v681
      %691 = vmatprep.subr.bf16.mxu0 0
      %692 = vmatpush1.bf16.msra.mxu0 %v682
      %693 = vmatprep.subr.bf16.mxu0 0
      %694 = vmatpush1.bf16.msra.mxu0 %v683
      %695 = vmatprep.subr.bf16.mxu0 0
      %696 = vmatpush1.bf16.msra.mxu0 %v684
      %697 = vmatprep.subr.bf16.mxu0 0
      %698 = vmatpush1.bf16.msra.mxu0 %v685
      %699 = vmatprep.subr.bf16.mxu0 0
      %700 = vmatpush1.bf16.msra.mxu0 %v686
      %701 = vmatprep.subr.bf16.mxu0 0
      %702 = vmatpush1.bf16.msra.mxu0 %v687
      %703 = vmatprep.subr.bf16.mxu0 0
      %704 = vmatpush1.bf16.msra.mxu0 %v688
      %705 = vmatprep.subr.bf16.mxu0 0
      %706 = vmatpush1.bf16.msra.mxu0 0
      %707 = vmatprep.subr.bf16.mxu0 0
      %708 = vmatpush1.bf16.msra.mxu0 0
      %709 = vmatprep.subr.bf16.mxu0 0
      %710 = vmatpush1.bf16.msra.mxu0 0
      %711 = vmatprep.subr.bf16.mxu0 0
      %712 = vmatpush1.bf16.msra.mxu0 0
      %713 = vmatprep.subr.bf16.mxu0 0
      %714 = vmatpush1.bf16.msra.mxu0 0
      %715 = vmatprep.subr.bf16.mxu0 0
      %716 = vmatpush1.bf16.msra.mxu0 0
      %717 = vmatprep.subr.bf16.mxu0 0
      %718 = vmatpush1.bf16.msra.mxu0 0
      %719 = vmatprep.subr.bf16.mxu0 0
      %720 = vmatpush1.bf16.msra.mxu0 0
      %721 = vmatprep.mubr.bf16.mxu0 0
      %722 = vmatmul.mubr.bf16.gmra.mrb[0].mxu0 %v680
      %v723 = vpop.f32.mrb[0].mxu0
      %v724 = vadd.f32 0.0, %v723
      %v725 = vpop.f32.mrb[0].mxu0
      %v726 = vpop.f32.mrb[0].mxu0
      %v727 = vpop.f32.mrb[0].mxu0
      %728 = vdwg.mxu0
      %vm729 = vcmask 1043456
      %v730 = vsel %vm729, %v679, 0.0
      %731 = vadd.xlane.f32.xlu0 %v730
      %v732 = vpop.xlane.xlu0 %731
      %v733 = vmax.f32 %v732, 1.0
      %v734 = vrcp.pop %v733
      %v735 = vmul.f32 %v724, %v734
      %v736 = vpack.c.bf16 %v735, %v735
      %v737 = vld [vmem:[%s346] sm:$0xf]
      %v738 = vld [vmem:[%s346 + $0x4] sm:$0xf]
      %v739 = vld [vmem:[%s346 + $0x8] sm:$0xf]
      %v740 = vld [vmem:[%s346 + $0xc] sm:$0xf]
      %v741 = vld [vmem:[%s346 + $0x10] sm:$0xf]
      %v742 = vld [vmem:[%s346 + $0x14] sm:$0xf]
      %v743 = vld [vmem:[%s346 + $0x18] sm:$0xf]
      %v744 = vld [vmem:[%s346 + $0x1c] sm:$0xf]
      %v745 = vlaneseq
      %v746 = vshrl.u32 %v745, 7
      %v747 = vsub.s32 2, %v746
      %v748 = vrot.slane %v419, %v747
      %v757 = vunpack.c.l.b16 %v737
      %v758 = vunpack.c.l.b16 %v738
      %v759 = vunpack.c.l.b16 %v739
      %v760 = vunpack.c.l.b16 %v740
      %v761 = vunpack.c.l.b16 %v741
      %v762 = vunpack.c.l.b16 %v742
      %v763 = vunpack.c.l.b16 %v743
      %v764 = vunpack.c.l.b16 %v744
      %v765 = vpack.c.b16 %v758, %v757
      %v766 = vpack.c.b16 %v760, %v759
      %v767 = vpack.c.b16 %v762, %v761
      %v768 = vpack.c.b16 %v764, %v763
      %v774 = vsel %vm420, %v736, 0
      %776 = vmatprep.subr.bf16.mxu0 0
      %777 = vmatpush1.bf16.msra.mxu0 %v765
      %778 = vmatprep.subr.bf16.mxu0 0
      %779 = vmatpush1.bf16.msra.mxu0 %v766
      %780 = vmatprep.subr.bf16.mxu0 0
      %781 = vmatpush1.bf16.msra.mxu0 %v767
      %782 = vmatprep.subr.bf16.mxu0 0
      %783 = vmatpush1.bf16.msra.mxu0 %v768
      %784 = vmatprep.subr.bf16.mxu0 0
      %785 = vmatpush1.bf16.msra.mxu0 0
      %786 = vmatprep.subr.bf16.mxu0 0
      %787 = vmatpush1.bf16.msra.mxu0 0
      %788 = vmatprep.subr.bf16.mxu0 0
      %789 = vmatpush1.bf16.msra.mxu0 0
      %790 = vmatprep.subr.bf16.mxu0 0
      %791 = vmatpush1.bf16.msra.mxu0 0
      %792 = vmatprep.subr.bf16.mxu0 0
      %793 = vmatpush1.bf16.msra.mxu0 0
      %794 = vmatprep.subr.bf16.mxu0 0
      %795 = vmatpush1.bf16.msra.mxu0 0
      %796 = vmatprep.subr.bf16.mxu0 0
      %797 = vmatpush1.bf16.msra.mxu0 0
      %798 = vmatprep.subr.bf16.mxu0 0
      %799 = vmatpush1.bf16.msra.mxu0 0
      %800 = vmatprep.subr.bf16.mxu0 0
      %801 = vmatpush1.bf16.msra.mxu0 0
      %802 = vmatprep.subr.bf16.mxu0 0
      %803 = vmatpush1.bf16.msra.mxu0 0
      %804 = vmatprep.subr.bf16.mxu0 0
      %805 = vmatpush1.bf16.msra.mxu0 0
      %806 = vmatprep.subr.bf16.mxu0 0
      %807 = vmatpush1.bf16.msra.mxu0 0
      %808 = vmatprep.mubr.bf16.mxu0 0
      %809 = vmatmul.mubr.bf16.gmra.mrb[0].mxu0 %v774
      %v810 = vpop.f32.mrb[0].mxu0
      %v811 = vadd.f32 %v748, %v810
      %v812 = vpop.f32.mrb[0].mxu0
      %v813 = vpop.f32.mrb[0].mxu0
      %v814 = vpop.f32.mrb[0].mxu0
      %815 = vdwg.mxu0
      %v816 = vld [vmem:[%s1] sm:$0xff]
      %v817 = vld [vmem:[%s1 + $0x8] sm:$0xff]
      %v818 = vld [vmem:[%s1 + $0x10] sm:$0xff]
      %v819 = vld [vmem:[%s1 + $0x18] sm:$0xff]
      %v820 = vld [vmem:[%s1 + $0x20] sm:$0xff]
      %v821 = vld [vmem:[%s1 + $0x28] sm:$0xff]
      %v822 = vld [vmem:[%s1 + $0x30] sm:$0xff]
      %v823 = vld [vmem:[%s1 + $0x38] sm:$0xff]
      %v824 = vld [vmem:[%s1 + $0x40] sm:$0xff]
      %v825 = vld [vmem:[%s1 + $0x48] sm:$0xff]
      %v826 = vld [vmem:[%s1 + $0x50] sm:$0xff]
      %v827 = vld [vmem:[%s1 + $0x58] sm:$0xff]
      %v828 = vld [vmem:[%s1 + $0x60] sm:$0xff]
      %v829 = vld [vmem:[%s1 + $0x68] sm:$0xff]
      %v830 = vld [vmem:[%s1 + $0x70] sm:$0xff]
      %v831 = vld [vmem:[%s1 + $0x78] sm:$0xff]
      %vm832 = vcmp.eq.s32.totalorder %v816, 0
      %vm833 = vcmp.eq.s32.totalorder %v817, 0
      %vm834 = vcmp.eq.s32.totalorder %v818, 0
      %vm835 = vcmp.eq.s32.totalorder %v819, 0
      %vm836 = vcmp.eq.s32.totalorder %v820, 0
      %vm837 = vcmp.eq.s32.totalorder %v821, 0
      %vm838 = vcmp.eq.s32.totalorder %v822, 0
      %vm839 = vcmp.eq.s32.totalorder %v823, 0
      %vm840 = vcmp.eq.s32.totalorder %v824, 0
      %vm841 = vcmp.eq.s32.totalorder %v825, 0
      %vm842 = vcmp.eq.s32.totalorder %v826, 0
      %vm843 = vcmp.eq.s32.totalorder %v827, 0
      %vm844 = vcmp.eq.s32.totalorder %v828, 0
      %vm845 = vcmp.eq.s32.totalorder %v829, 0
      %vm846 = vcmp.eq.s32.totalorder %v830, 0
      %vm847 = vcmp.eq.s32.totalorder %v831, 0
      %v848 = vsel %vm832, 1.0, 0.0
      %v849 = vsel %vm833, 1.0, 0.0
      %v850 = vsel %vm834, 1.0, 0.0
      %v851 = vsel %vm835, 1.0, 0.0
      %v852 = vsel %vm836, 1.0, 0.0
      %v853 = vsel %vm837, 1.0, 0.0
      %v854 = vsel %vm838, 1.0, 0.0
      %v855 = vsel %vm839, 1.0, 0.0
      %v856 = vsel %vm840, 1.0, 0.0
      %v857 = vsel %vm841, 1.0, 0.0
      %v858 = vsel %vm842, 1.0, 0.0
      %v859 = vsel %vm843, 1.0, 0.0
      %v860 = vsel %vm844, 1.0, 0.0
      %v861 = vsel %vm845, 1.0, 0.0
      %v862 = vsel %vm846, 1.0, 0.0
      %v863 = vsel %vm847, 1.0, 0.0
      %865 = vset.pattern.permute.xlu0 0
      %866 = vperm.xlu0 %865, %v848
      %v867 = vpop.permute.xlu0 %866
      %870 = vset.pattern.permute.xlu0 0
      %871 = vperm.xlu0 %870, %v849
      %v872 = vpop.permute.xlu0 %871
      %875 = vset.pattern.permute.xlu0 0
      %876 = vperm.xlu0 %875, %v850
      %v877 = vpop.permute.xlu0 %876
      %880 = vset.pattern.permute.xlu0 0
      %881 = vperm.xlu0 %880, %v851
      %v882 = vpop.permute.xlu0 %881
      %885 = vset.pattern.permute.xlu0 0
      %886 = vperm.xlu0 %885, %v852
      %v887 = vpop.permute.xlu0 %886
      %890 = vset.pattern.permute.xlu0 0
      %891 = vperm.xlu0 %890, %v853
      %v892 = vpop.permute.xlu0 %891
      %895 = vset.pattern.permute.xlu0 0
      %896 = vperm.xlu0 %895, %v854
      %v897 = vpop.permute.xlu0 %896
      %900 = vset.pattern.permute.xlu0 0
      %901 = vperm.xlu0 %900, %v855
      %v902 = vpop.permute.xlu0 %901
      %905 = vset.pattern.permute.xlu0 0
      %906 = vperm.xlu0 %905, %v856
      %v907 = vpop.permute.xlu0 %906
      %910 = vset.pattern.permute.xlu0 0
      %911 = vperm.xlu0 %910, %v857
      %v912 = vpop.permute.xlu0 %911
      %915 = vset.pattern.permute.xlu0 0
      %916 = vperm.xlu0 %915, %v858
      %v917 = vpop.permute.xlu0 %916
      %920 = vset.pattern.permute.xlu0 0
      %921 = vperm.xlu0 %920, %v859
      %v922 = vpop.permute.xlu0 %921
      %925 = vset.pattern.permute.xlu0 0
      %926 = vperm.xlu0 %925, %v860
      %v927 = vpop.permute.xlu0 %926
      %930 = vset.pattern.permute.xlu0 0
      %931 = vperm.xlu0 %930, %v861
      %v932 = vpop.permute.xlu0 %931
      %935 = vset.pattern.permute.xlu0 0
      %936 = vperm.xlu0 %935, %v862
      %v937 = vpop.permute.xlu0 %936
      %940 = vset.pattern.permute.xlu0 0
      %941 = vperm.xlu0 %940, %v863
      %v942 = vpop.permute.xlu0 %941
      %v944 = vlaneseq
      %v945 = vshrl.u32 %v944, 7
      %v946 = vsub.s32 0, %v945
      %v947 = vrot.slane %v811, %v946
      %v948 = vmul.f32 %v867, %v947
      %v949 = vmul.f32 %v872, %v947
      %v950 = vmul.f32 %v877, %v947
      %v951 = vmul.f32 %v882, %v947
      %v952 = vmul.f32 %v887, %v947
      %v953 = vmul.f32 %v892, %v947
      %v954 = vmul.f32 %v897, %v947
      %v955 = vmul.f32 %v902, %v947
      %v956 = vmul.f32 %v907, %v947
      %v957 = vmul.f32 %v912, %v947
      %v958 = vmul.f32 %v917, %v947
      %v959 = vmul.f32 %v922, %v947
      %v960 = vmul.f32 %v927, %v947
      %v961 = vmul.f32 %v932, %v947
      %v962 = vmul.f32 %v937, %v947
      %v963 = vmul.f32 %v942, %v947
      %v964 = vadd.f32 %v948, 0.0
      %v965 = vadd.f32 %v949, 0.0
      %v966 = vadd.f32 %v950, 0.0
      %v967 = vadd.f32 %v951, 0.0
      %v968 = vadd.f32 %v952, 0.0
      %v969 = vadd.f32 %v953, 0.0
      %v970 = vadd.f32 %v954, 0.0
      %v971 = vadd.f32 %v955, 0.0
      %v972 = vadd.f32 %v956, 0.0
      %v973 = vadd.f32 %v957, 0.0
      %v974 = vadd.f32 %v958, 0.0
      %v975 = vadd.f32 %v959, 0.0
      %v976 = vadd.f32 %v960, 0.0
      %v977 = vadd.f32 %v961, 0.0
      %v978 = vadd.f32 %v962, 0.0
      %v979 = vadd.f32 %v963, 0.0
      %vm980 = vcmp.eq.s32.totalorder %v816, 1
      %vm981 = vcmp.eq.s32.totalorder %v817, 1
      %vm982 = vcmp.eq.s32.totalorder %v818, 1
      %vm983 = vcmp.eq.s32.totalorder %v819, 1
      %vm984 = vcmp.eq.s32.totalorder %v820, 1
      %vm985 = vcmp.eq.s32.totalorder %v821, 1
      %vm986 = vcmp.eq.s32.totalorder %v822, 1
      %vm987 = vcmp.eq.s32.totalorder %v823, 1
      %vm988 = vcmp.eq.s32.totalorder %v824, 1
      %vm989 = vcmp.eq.s32.totalorder %v825, 1
      %vm990 = vcmp.eq.s32.totalorder %v826, 1
      %vm991 = vcmp.eq.s32.totalorder %v827, 1
      %vm992 = vcmp.eq.s32.totalorder %v828, 1
      %vm993 = vcmp.eq.s32.totalorder %v829, 1
      %vm994 = vcmp.eq.s32.totalorder %v830, 1
      %vm995 = vcmp.eq.s32.totalorder %v831, 1
      %v996 = vsel %vm980, 1.0, 0.0
      %v997 = vsel %vm981, 1.0, 0.0
      %v998 = vsel %vm982, 1.0, 0.0
      %v999 = vsel %vm983, 1.0, 0.0
      %v1000 = vsel %vm984, 1.0, 0.0
      %v1001 = vsel %vm985, 1.0, 0.0
      %v1002 = vsel %vm986, 1.0, 0.0
      %v1003 = vsel %vm987, 1.0, 0.0
      %v1004 = vsel %vm988, 1.0, 0.0
      %v1005 = vsel %vm989, 1.0, 0.0
      %v1006 = vsel %vm990, 1.0, 0.0
      %v1007 = vsel %vm991, 1.0, 0.0
      %v1008 = vsel %vm992, 1.0, 0.0
      %v1009 = vsel %vm993, 1.0, 0.0
      %v1010 = vsel %vm994, 1.0, 0.0
      %v1011 = vsel %vm995, 1.0, 0.0
      %1013 = vset.pattern.permute.xlu0 0
      %1014 = vperm.xlu0 %1013, %v996
      %v1015 = vpop.permute.xlu0 %1014
      %1018 = vset.pattern.permute.xlu0 0
      %1019 = vperm.xlu0 %1018, %v997
      %v1020 = vpop.permute.xlu0 %1019
      %1023 = vset.pattern.permute.xlu0 0
      %1024 = vperm.xlu0 %1023, %v998
      %v1025 = vpop.permute.xlu0 %1024
      %1028 = vset.pattern.permute.xlu0 0
      %1029 = vperm.xlu0 %1028, %v999
      %v1030 = vpop.permute.xlu0 %1029
      %1033 = vset.pattern.permute.xlu0 0
      %1034 = vperm.xlu0 %1033, %v1000
      %v1035 = vpop.permute.xlu0 %1034
      %1038 = vset.pattern.permute.xlu0 0
      %1039 = vperm.xlu0 %1038, %v1001
      %v1040 = vpop.permute.xlu0 %1039
      %1043 = vset.pattern.permute.xlu0 0
      %1044 = vperm.xlu0 %1043, %v1002
      %v1045 = vpop.permute.xlu0 %1044
      %1048 = vset.pattern.permute.xlu0 0
      %1049 = vperm.xlu0 %1048, %v1003
      %v1050 = vpop.permute.xlu0 %1049
      %1053 = vset.pattern.permute.xlu0 0
      %1054 = vperm.xlu0 %1053, %v1004
      %v1055 = vpop.permute.xlu0 %1054
      %1058 = vset.pattern.permute.xlu0 0
      %1059 = vperm.xlu0 %1058, %v1005
      %v1060 = vpop.permute.xlu0 %1059
      %1063 = vset.pattern.permute.xlu0 0
      %1064 = vperm.xlu0 %1063, %v1006
      %v1065 = vpop.permute.xlu0 %1064
      %1068 = vset.pattern.permute.xlu0 0
      %1069 = vperm.xlu0 %1068, %v1007
      %v1070 = vpop.permute.xlu0 %1069
      %1073 = vset.pattern.permute.xlu0 0
      %1074 = vperm.xlu0 %1073, %v1008
      %v1075 = vpop.permute.xlu0 %1074
      %1078 = vset.pattern.permute.xlu0 0
      %1079 = vperm.xlu0 %1078, %v1009
      %v1080 = vpop.permute.xlu0 %1079
      %1083 = vset.pattern.permute.xlu0 0
      %1084 = vperm.xlu0 %1083, %v1010
      %v1085 = vpop.permute.xlu0 %1084
      %1088 = vset.pattern.permute.xlu0 0
      %1089 = vperm.xlu0 %1088, %v1011
      %v1090 = vpop.permute.xlu0 %1089
      %v1092 = vlaneseq
      %v1093 = vshrl.u32 %v1092, 7
      %v1094 = vsub.s32 1, %v1093
      %v1095 = vrot.slane %v811, %v1094
      %v1096 = vmul.f32 %v1015, %v1095
      %v1097 = vmul.f32 %v1020, %v1095
      %v1098 = vmul.f32 %v1025, %v1095
      %v1099 = vmul.f32 %v1030, %v1095
      %v1100 = vmul.f32 %v1035, %v1095
      %v1101 = vmul.f32 %v1040, %v1095
      %v1102 = vmul.f32 %v1045, %v1095
      %v1103 = vmul.f32 %v1050, %v1095
      %v1104 = vmul.f32 %v1055, %v1095
      %v1105 = vmul.f32 %v1060, %v1095
      %v1106 = vmul.f32 %v1065, %v1095
      %v1107 = vmul.f32 %v1070, %v1095
      %v1108 = vmul.f32 %v1075, %v1095
      %v1109 = vmul.f32 %v1080, %v1095
      %v1110 = vmul.f32 %v1085, %v1095
      %v1111 = vmul.f32 %v1090, %v1095
      %v1112 = vadd.f32 %v964, %v1096
      %v1113 = vadd.f32 %v965, %v1097
      %v1114 = vadd.f32 %v966, %v1098
      %v1115 = vadd.f32 %v967, %v1099
      %v1116 = vadd.f32 %v968, %v1100
      %v1117 = vadd.f32 %v969, %v1101
      %v1118 = vadd.f32 %v970, %v1102
      %v1119 = vadd.f32 %v971, %v1103
      %v1120 = vadd.f32 %v972, %v1104
      %v1121 = vadd.f32 %v973, %v1105
      %v1122 = vadd.f32 %v974, %v1106
      %v1123 = vadd.f32 %v975, %v1107
      %v1124 = vadd.f32 %v976, %v1108
      %v1125 = vadd.f32 %v977, %v1109
      %v1126 = vadd.f32 %v978, %v1110
      %v1127 = vadd.f32 %v979, %v1111
      %vm1128 = vcmp.eq.s32.totalorder %v816, 2
      %vm1129 = vcmp.eq.s32.totalorder %v817, 2
      %vm1130 = vcmp.eq.s32.totalorder %v818, 2
      %vm1131 = vcmp.eq.s32.totalorder %v819, 2
      %vm1132 = vcmp.eq.s32.totalorder %v820, 2
      %vm1133 = vcmp.eq.s32.totalorder %v821, 2
      %vm1134 = vcmp.eq.s32.totalorder %v822, 2
      %vm1135 = vcmp.eq.s32.totalorder %v823, 2
      %vm1136 = vcmp.eq.s32.totalorder %v824, 2
      %vm1137 = vcmp.eq.s32.totalorder %v825, 2
      %vm1138 = vcmp.eq.s32.totalorder %v826, 2
      %vm1139 = vcmp.eq.s32.totalorder %v827, 2
      %vm1140 = vcmp.eq.s32.totalorder %v828, 2
      %vm1141 = vcmp.eq.s32.totalorder %v829, 2
      %vm1142 = vcmp.eq.s32.totalorder %v830, 2
      %vm1143 = vcmp.eq.s32.totalorder %v831, 2
      %v1144 = vsel %vm1128, 1.0, 0.0
      %v1145 = vsel %vm1129, 1.0, 0.0
      %v1146 = vsel %vm1130, 1.0, 0.0
      %v1147 = vsel %vm1131, 1.0, 0.0
      %v1148 = vsel %vm1132, 1.0, 0.0
      %v1149 = vsel %vm1133, 1.0, 0.0
      %v1150 = vsel %vm1134, 1.0, 0.0
      %v1151 = vsel %vm1135, 1.0, 0.0
      %v1152 = vsel %vm1136, 1.0, 0.0
      %v1153 = vsel %vm1137, 1.0, 0.0
      %v1154 = vsel %vm1138, 1.0, 0.0
      %v1155 = vsel %vm1139, 1.0, 0.0
      %v1156 = vsel %vm1140, 1.0, 0.0
      %v1157 = vsel %vm1141, 1.0, 0.0
      %v1158 = vsel %vm1142, 1.0, 0.0
      %v1159 = vsel %vm1143, 1.0, 0.0
      %1161 = vset.pattern.permute.xlu0 0
      %1162 = vperm.xlu0 %1161, %v1144
      %v1163 = vpop.permute.xlu0 %1162
      %1166 = vset.pattern.permute.xlu0 0
      %1167 = vperm.xlu0 %1166, %v1145
      %v1168 = vpop.permute.xlu0 %1167
      %1171 = vset.pattern.permute.xlu0 0
      %1172 = vperm.xlu0 %1171, %v1146
      %v1173 = vpop.permute.xlu0 %1172
      %1176 = vset.pattern.permute.xlu0 0
      %1177 = vperm.xlu0 %1176, %v1147
      %v1178 = vpop.permute.xlu0 %1177
      %1181 = vset.pattern.permute.xlu0 0
      %1182 = vperm.xlu0 %1181, %v1148
      %v1183 = vpop.permute.xlu0 %1182
      %1186 = vset.pattern.permute.xlu0 0
      %1187 = vperm.xlu0 %1186, %v1149
      %v1188 = vpop.permute.xlu0 %1187
      %1191 = vset.pattern.permute.xlu0 0
      %1192 = vperm.xlu0 %1191, %v1150
      %v1193 = vpop.permute.xlu0 %1192
      %1196 = vset.pattern.permute.xlu0 0
      %1197 = vperm.xlu0 %1196, %v1151
      %v1198 = vpop.permute.xlu0 %1197
      %1201 = vset.pattern.permute.xlu0 0
      %1202 = vperm.xlu0 %1201, %v1152
      %v1203 = vpop.permute.xlu0 %1202
      %1206 = vset.pattern.permute.xlu0 0
      %1207 = vperm.xlu0 %1206, %v1153
      %v1208 = vpop.permute.xlu0 %1207
      %1211 = vset.pattern.permute.xlu0 0
      %1212 = vperm.xlu0 %1211, %v1154
      %v1213 = vpop.permute.xlu0 %1212
      %1216 = vset.pattern.permute.xlu0 0
      %1217 = vperm.xlu0 %1216, %v1155
      %v1218 = vpop.permute.xlu0 %1217
      %1221 = vset.pattern.permute.xlu0 0
      %1222 = vperm.xlu0 %1221, %v1156
      %v1223 = vpop.permute.xlu0 %1222
      %1226 = vset.pattern.permute.xlu0 0
      %1227 = vperm.xlu0 %1226, %v1157
      %v1228 = vpop.permute.xlu0 %1227
      %1231 = vset.pattern.permute.xlu0 0
      %1232 = vperm.xlu0 %1231, %v1158
      %v1233 = vpop.permute.xlu0 %1232
      %1236 = vset.pattern.permute.xlu0 0
      %1237 = vperm.xlu0 %1236, %v1159
      %v1238 = vpop.permute.xlu0 %1237
      %v1240 = vlaneseq
      %v1241 = vshrl.u32 %v1240, 7
      %v1242 = vsub.s32 2, %v1241
      %v1243 = vrot.slane %v811, %v1242
      %v1244 = vmul.f32 %v1163, %v1243
      %v1245 = vmul.f32 %v1168, %v1243
      %v1246 = vmul.f32 %v1173, %v1243
      %v1247 = vmul.f32 %v1178, %v1243
      %v1248 = vmul.f32 %v1183, %v1243
      %v1249 = vmul.f32 %v1188, %v1243
      %v1250 = vmul.f32 %v1193, %v1243
      %v1251 = vmul.f32 %v1198, %v1243
      %v1252 = vmul.f32 %v1203, %v1243
      %v1253 = vmul.f32 %v1208, %v1243
      %v1254 = vmul.f32 %v1213, %v1243
      %v1255 = vmul.f32 %v1218, %v1243
      %v1256 = vmul.f32 %v1223, %v1243
      %v1257 = vmul.f32 %v1228, %v1243
      %v1258 = vmul.f32 %v1233, %v1243
      %v1259 = vmul.f32 %v1238, %v1243
      %v1260 = vadd.f32 %v1112, %v1244
      %v1261 = vadd.f32 %v1113, %v1245
      %v1262 = vadd.f32 %v1114, %v1246
      %v1263 = vadd.f32 %v1115, %v1247
      %v1264 = vadd.f32 %v1116, %v1248
      %v1265 = vadd.f32 %v1117, %v1249
      %v1266 = vadd.f32 %v1118, %v1250
      %v1267 = vadd.f32 %v1119, %v1251
      %v1268 = vadd.f32 %v1120, %v1252
      %v1269 = vadd.f32 %v1121, %v1253
      %v1270 = vadd.f32 %v1122, %v1254
      %v1271 = vadd.f32 %v1123, %v1255
      %v1272 = vadd.f32 %v1124, %v1256
      %v1273 = vadd.f32 %v1125, %v1257
      %v1274 = vadd.f32 %v1126, %v1258
      %v1275 = vadd.f32 %v1127, %v1259
      %vm1276 = vcmp.eq.s32.totalorder %v816, 3
      %vm1277 = vcmp.eq.s32.totalorder %v817, 3
      %vm1278 = vcmp.eq.s32.totalorder %v818, 3
      %vm1279 = vcmp.eq.s32.totalorder %v819, 3
      %vm1280 = vcmp.eq.s32.totalorder %v820, 3
      %vm1281 = vcmp.eq.s32.totalorder %v821, 3
      %vm1282 = vcmp.eq.s32.totalorder %v822, 3
      %vm1283 = vcmp.eq.s32.totalorder %v823, 3
      %vm1284 = vcmp.eq.s32.totalorder %v824, 3
      %vm1285 = vcmp.eq.s32.totalorder %v825, 3
      %vm1286 = vcmp.eq.s32.totalorder %v826, 3
      %vm1287 = vcmp.eq.s32.totalorder %v827, 3
      %vm1288 = vcmp.eq.s32.totalorder %v828, 3
      %vm1289 = vcmp.eq.s32.totalorder %v829, 3
      %vm1290 = vcmp.eq.s32.totalorder %v830, 3
      %vm1291 = vcmp.eq.s32.totalorder %v831, 3
      %v1292 = vsel %vm1276, 1.0, 0.0
      %v1293 = vsel %vm1277, 1.0, 0.0
      %v1294 = vsel %vm1278, 1.0, 0.0
      %v1295 = vsel %vm1279, 1.0, 0.0
      %v1296 = vsel %vm1280, 1.0, 0.0
      %v1297 = vsel %vm1281, 1.0, 0.0
      %v1298 = vsel %vm1282, 1.0, 0.0
      %v1299 = vsel %vm1283, 1.0, 0.0
      %v1300 = vsel %vm1284, 1.0, 0.0
      %v1301 = vsel %vm1285, 1.0, 0.0
      %v1302 = vsel %vm1286, 1.0, 0.0
      %v1303 = vsel %vm1287, 1.0, 0.0
      %v1304 = vsel %vm1288, 1.0, 0.0
      %v1305 = vsel %vm1289, 1.0, 0.0
      %v1306 = vsel %vm1290, 1.0, 0.0
      %v1307 = vsel %vm1291, 1.0, 0.0
      %1309 = vset.pattern.permute.xlu0 0
      %1310 = vperm.xlu0 %1309, %v1292
      %v1311 = vpop.permute.xlu0 %1310
      %1314 = vset.pattern.permute.xlu0 0
      %1315 = vperm.xlu0 %1314, %v1293
      %v1316 = vpop.permute.xlu0 %1315
      %1319 = vset.pattern.permute.xlu0 0
      %1320 = vperm.xlu0 %1319, %v1294
      %v1321 = vpop.permute.xlu0 %1320
      %1324 = vset.pattern.permute.xlu0 0
      %1325 = vperm.xlu0 %1324, %v1295
      %v1326 = vpop.permute.xlu0 %1325
      %1329 = vset.pattern.permute.xlu0 0
      %1330 = vperm.xlu0 %1329, %v1296
      %v1331 = vpop.permute.xlu0 %1330
      %1334 = vset.pattern.permute.xlu0 0
      %1335 = vperm.xlu0 %1334, %v1297
      %v1336 = vpop.permute.xlu0 %1335
      %1339 = vset.pattern.permute.xlu0 0
      %1340 = vperm.xlu0 %1339, %v1298
      %v1341 = vpop.permute.xlu0 %1340
      %1344 = vset.pattern.permute.xlu0 0
      %1345 = vperm.xlu0 %1344, %v1299
      %v1346 = vpop.permute.xlu0 %1345
      %1349 = vset.pattern.permute.xlu0 0
      %1350 = vperm.xlu0 %1349, %v1300
      %v1351 = vpop.permute.xlu0 %1350
      %1354 = vset.pattern.permute.xlu0 0
      %1355 = vperm.xlu0 %1354, %v1301
      %v1356 = vpop.permute.xlu0 %1355
      %1359 = vset.pattern.permute.xlu0 0
      %1360 = vperm.xlu0 %1359, %v1302
      %v1361 = vpop.permute.xlu0 %1360
      %1364 = vset.pattern.permute.xlu0 0
      %1365 = vperm.xlu0 %1364, %v1303
      %v1366 = vpop.permute.xlu0 %1365
      %1369 = vset.pattern.permute.xlu0 0
      %1370 = vperm.xlu0 %1369, %v1304
      %v1371 = vpop.permute.xlu0 %1370
      %1374 = vset.pattern.permute.xlu0 0
      %1375 = vperm.xlu0 %1374, %v1305
      %v1376 = vpop.permute.xlu0 %1375
      %1379 = vset.pattern.permute.xlu0 0
      %1380 = vperm.xlu0 %1379, %v1306
      %v1381 = vpop.permute.xlu0 %1380
      %1384 = vset.pattern.permute.xlu0 0
      %1385 = vperm.xlu0 %1384, %v1307
      %v1386 = vpop.permute.xlu0 %1385
      %v1388 = vlaneseq
      %v1389 = vshrl.u32 %v1388, 7
      %v1390 = vsub.s32 3, %v1389
      %v1391 = vrot.slane %v811, %v1390
      %v1392 = vmul.f32 %v1311, %v1391
      %v1393 = vmul.f32 %v1316, %v1391
      %v1394 = vmul.f32 %v1321, %v1391
      %v1395 = vmul.f32 %v1326, %v1391
      %v1396 = vmul.f32 %v1331, %v1391
      %v1397 = vmul.f32 %v1336, %v1391
      %v1398 = vmul.f32 %v1341, %v1391
      %v1399 = vmul.f32 %v1346, %v1391
      %v1400 = vmul.f32 %v1351, %v1391
      %v1401 = vmul.f32 %v1356, %v1391
      %v1402 = vmul.f32 %v1361, %v1391
      %v1403 = vmul.f32 %v1366, %v1391
      %v1404 = vmul.f32 %v1371, %v1391
      %v1405 = vmul.f32 %v1376, %v1391
      %v1406 = vmul.f32 %v1381, %v1391
      %v1407 = vmul.f32 %v1386, %v1391
      %v1408 = vadd.f32 %v1260, %v1392
      %v1409 = vadd.f32 %v1261, %v1393
      %v1410 = vadd.f32 %v1262, %v1394
      %v1411 = vadd.f32 %v1263, %v1395
      %v1412 = vadd.f32 %v1264, %v1396
      %v1413 = vadd.f32 %v1265, %v1397
      %v1414 = vadd.f32 %v1266, %v1398
      %v1415 = vadd.f32 %v1267, %v1399
      %v1416 = vadd.f32 %v1268, %v1400
      %v1417 = vadd.f32 %v1269, %v1401
      %v1418 = vadd.f32 %v1270, %v1402
      %v1419 = vadd.f32 %v1271, %v1403
      %v1420 = vadd.f32 %v1272, %v1404
      %v1421 = vadd.f32 %v1273, %v1405
      %v1422 = vadd.f32 %v1274, %v1406
      %v1423 = vadd.f32 %v1275, %v1407
      %v1424 = vadd.f32 %v403, %v1408
      %v1425 = vadd.f32 %v404, %v1409
      %v1426 = vadd.f32 %v405, %v1410
      %v1427 = vadd.f32 %v406, %v1411
      %v1428 = vadd.f32 %v407, %v1412
      %v1429 = vadd.f32 %v408, %v1413
      %v1430 = vadd.f32 %v409, %v1414
      %v1431 = vadd.f32 %v410, %v1415
      %v1432 = vadd.f32 %v411, %v1416
      %v1433 = vadd.f32 %v412, %v1417
      %v1434 = vadd.f32 %v413, %v1418
      %v1435 = vadd.f32 %v414, %v1419
      %v1436 = vadd.f32 %v415, %v1420
      %v1437 = vadd.f32 %v416, %v1421
      %v1438 = vadd.f32 %v417, %v1422
      %v1439 = vadd.f32 %v418, %v1423
      %v1440 = vsel %vm420, %v1424, 0.0
      %1441 = vadd.xlane.f32.xlu0 %v1440
      %v1442 = vpop.xlane.xlu0 %1441
      %v1443 = vsel %vm420, %v1425, 0.0
      %1444 = vadd.xlane.f32.xlu0 %v1443
      %v1445 = vpop.xlane.xlu0 %1444
      %v1446 = vsel %vm420, %v1426, 0.0
      %1447 = vadd.xlane.f32.xlu0 %v1446
      %v1448 = vpop.xlane.xlu0 %1447
      %v1449 = vsel %vm420, %v1427, 0.0
      %1450 = vadd.xlane.f32.xlu0 %v1449
      %v1451 = vpop.xlane.xlu0 %1450
      %v1452 = vsel %vm420, %v1428, 0.0
      %1453 = vadd.xlane.f32.xlu0 %v1452
      %v1454 = vpop.xlane.xlu0 %1453
      %v1455 = vsel %vm420, %v1429, 0.0
      %1456 = vadd.xlane.f32.xlu0 %v1455
      %v1457 = vpop.xlane.xlu0 %1456
      %v1458 = vsel %vm420, %v1430, 0.0
      %1459 = vadd.xlane.f32.xlu0 %v1458
      %v1460 = vpop.xlane.xlu0 %1459
      %v1461 = vsel %vm420, %v1431, 0.0
      %1462 = vadd.xlane.f32.xlu0 %v1461
      %v1463 = vpop.xlane.xlu0 %1462
      %v1464 = vsel %vm420, %v1432, 0.0
      %1465 = vadd.xlane.f32.xlu0 %v1464
      %v1466 = vpop.xlane.xlu0 %1465
      %v1467 = vsel %vm420, %v1433, 0.0
      %1468 = vadd.xlane.f32.xlu0 %v1467
      %v1469 = vpop.xlane.xlu0 %1468
      %v1470 = vsel %vm420, %v1434, 0.0
      %1471 = vadd.xlane.f32.xlu0 %v1470
      %v1472 = vpop.xlane.xlu0 %1471
      %v1473 = vsel %vm420, %v1435, 0.0
      %1474 = vadd.xlane.f32.xlu0 %v1473
      %v1475 = vpop.xlane.xlu0 %1474
      %v1476 = vsel %vm420, %v1436, 0.0
      %1477 = vadd.xlane.f32.xlu0 %v1476
      %v1478 = vpop.xlane.xlu0 %1477
      %v1479 = vsel %vm420, %v1437, 0.0
      %1480 = vadd.xlane.f32.xlu0 %v1479
      %v1481 = vpop.xlane.xlu0 %1480
      %v1482 = vsel %vm420, %v1438, 0.0
      %1483 = vadd.xlane.f32.xlu0 %v1482
      %v1484 = vpop.xlane.xlu0 %1483
      %v1485 = vsel %vm420, %v1439, 0.0
      %1486 = vadd.xlane.f32.xlu0 %v1485
      %v1487 = vpop.xlane.xlu0 %1486
      %v1488 = vmul.f32 %v1442, %v469
      %v1489 = vmul.f32 %v1445, %v469
      %v1490 = vmul.f32 %v1448, %v469
      %v1491 = vmul.f32 %v1451, %v469
      %v1492 = vmul.f32 %v1454, %v469
      %v1493 = vmul.f32 %v1457, %v469
      %v1494 = vmul.f32 %v1460, %v469
      %v1495 = vmul.f32 %v1463, %v469
      %v1496 = vmul.f32 %v1466, %v469
      %v1497 = vmul.f32 %v1469, %v469
      %v1498 = vmul.f32 %v1472, %v469
      %v1499 = vmul.f32 %v1475, %v469
      %v1500 = vmul.f32 %v1478, %v469
      %v1501 = vmul.f32 %v1481, %v469
      %v1502 = vmul.f32 %v1484, %v469
      %v1503 = vmul.f32 %v1487, %v469
      %v1504 = vsub.f32 %v1424, %v1488
      %v1505 = vsub.f32 %v1425, %v1489
      %v1506 = vsub.f32 %v1426, %v1490
      %v1507 = vsub.f32 %v1427, %v1491
      %v1508 = vsub.f32 %v1428, %v1492
      %v1509 = vsub.f32 %v1429, %v1493
      %v1510 = vsub.f32 %v1430, %v1494
      %v1511 = vsub.f32 %v1431, %v1495
      %v1512 = vsub.f32 %v1432, %v1496
      %v1513 = vsub.f32 %v1433, %v1497
      %v1514 = vsub.f32 %v1434, %v1498
      %v1515 = vsub.f32 %v1435, %v1499
      %v1516 = vsub.f32 %v1436, %v1500
      %v1517 = vsub.f32 %v1437, %v1501
      %v1518 = vsub.f32 %v1438, %v1502
      %v1519 = vsub.f32 %v1439, %v1503
      %v1520 = vmul.f32 %v1504, %v1504
      %v1521 = vmul.f32 %v1505, %v1505
      %v1522 = vmul.f32 %v1506, %v1506
      %v1523 = vmul.f32 %v1507, %v1507
      %v1524 = vmul.f32 %v1508, %v1508
      %v1525 = vmul.f32 %v1509, %v1509
      %v1526 = vmul.f32 %v1510, %v1510
      %v1527 = vmul.f32 %v1511, %v1511
      %v1528 = vmul.f32 %v1512, %v1512
      %v1529 = vmul.f32 %v1513, %v1513
      %v1530 = vmul.f32 %v1514, %v1514
      %v1531 = vmul.f32 %v1515, %v1515
      %v1532 = vmul.f32 %v1516, %v1516
      %v1533 = vmul.f32 %v1517, %v1517
      %v1534 = vmul.f32 %v1518, %v1518
      %v1535 = vmul.f32 %v1519, %v1519
      %v1536 = vsel %vm420, %v1520, 0.0
      %1537 = vadd.xlane.f32.xlu0 %v1536
      %v1538 = vpop.xlane.xlu0 %1537
      %v1539 = vsel %vm420, %v1521, 0.0
      %1540 = vadd.xlane.f32.xlu0 %v1539
      %v1541 = vpop.xlane.xlu0 %1540
      %v1542 = vsel %vm420, %v1522, 0.0
      %1543 = vadd.xlane.f32.xlu0 %v1542
      %v1544 = vpop.xlane.xlu0 %1543
      %v1545 = vsel %vm420, %v1523, 0.0
      %1546 = vadd.xlane.f32.xlu0 %v1545
      %v1547 = vpop.xlane.xlu0 %1546
      %v1548 = vsel %vm420, %v1524, 0.0
      %1549 = vadd.xlane.f32.xlu0 %v1548
      %v1550 = vpop.xlane.xlu0 %1549
      %v1551 = vsel %vm420, %v1525, 0.0
      %1552 = vadd.xlane.f32.xlu0 %v1551
      %v1553 = vpop.xlane.xlu0 %1552
      %v1554 = vsel %vm420, %v1526, 0.0
      %1555 = vadd.xlane.f32.xlu0 %v1554
      %v1556 = vpop.xlane.xlu0 %1555
      %v1557 = vsel %vm420, %v1527, 0.0
      %1558 = vadd.xlane.f32.xlu0 %v1557
      %v1559 = vpop.xlane.xlu0 %1558
      %v1560 = vsel %vm420, %v1528, 0.0
      %1561 = vadd.xlane.f32.xlu0 %v1560
      %v1562 = vpop.xlane.xlu0 %1561
      %v1563 = vsel %vm420, %v1529, 0.0
      %1564 = vadd.xlane.f32.xlu0 %v1563
      %v1565 = vpop.xlane.xlu0 %1564
      %v1566 = vsel %vm420, %v1530, 0.0
      %1567 = vadd.xlane.f32.xlu0 %v1566
      %v1568 = vpop.xlane.xlu0 %1567
      %v1569 = vsel %vm420, %v1531, 0.0
      %1570 = vadd.xlane.f32.xlu0 %v1569
      %v1571 = vpop.xlane.xlu0 %1570
      %v1572 = vsel %vm420, %v1532, 0.0
      %1573 = vadd.xlane.f32.xlu0 %v1572
      %v1574 = vpop.xlane.xlu0 %1573
      %v1575 = vsel %vm420, %v1533, 0.0
      %1576 = vadd.xlane.f32.xlu0 %v1575
      %v1577 = vpop.xlane.xlu0 %1576
      %v1578 = vsel %vm420, %v1534, 0.0
      %1579 = vadd.xlane.f32.xlu0 %v1578
      %v1580 = vpop.xlane.xlu0 %1579
      %v1581 = vsel %vm420, %v1535, 0.0
      %1582 = vadd.xlane.f32.xlu0 %v1581
      %v1583 = vpop.xlane.xlu0 %1582
      %v1584 = vmul.f32 %v1538, %v469
      %v1585 = vmul.f32 %v1541, %v469
      %v1586 = vmul.f32 %v1544, %v469
      %v1587 = vmul.f32 %v1547, %v469
      %v1588 = vmul.f32 %v1550, %v469
      %v1589 = vmul.f32 %v1553, %v469
      %v1590 = vmul.f32 %v1556, %v469
      %v1591 = vmul.f32 %v1559, %v469
      %v1592 = vmul.f32 %v1562, %v469
      %v1593 = vmul.f32 %v1565, %v469
      %v1594 = vmul.f32 %v1568, %v469
      %v1595 = vmul.f32 %v1571, %v469
      %v1596 = vmul.f32 %v1574, %v469
      %v1597 = vmul.f32 %v1577, %v469
      %v1598 = vmul.f32 %v1580, %v469
      %v1599 = vmul.f32 %v1583, %v469
      %v1600 = vadd.f32 %v1584, 1e-05
      %v1601 = vadd.f32 %v1585, 1e-05
      %v1602 = vadd.f32 %v1586, 1e-05
      %v1603 = vadd.f32 %v1587, 1e-05
      %v1604 = vadd.f32 %v1588, 1e-05
      %v1605 = vadd.f32 %v1589, 1e-05
      %v1606 = vadd.f32 %v1590, 1e-05
      %v1607 = vadd.f32 %v1591, 1e-05
      %v1608 = vadd.f32 %v1592, 1e-05
      %v1609 = vadd.f32 %v1593, 1e-05
      %v1610 = vadd.f32 %v1594, 1e-05
      %v1611 = vadd.f32 %v1595, 1e-05
      %v1612 = vadd.f32 %v1596, 1e-05
      %v1613 = vadd.f32 %v1597, 1e-05
      %v1614 = vadd.f32 %v1598, 1e-05
      %v1615 = vadd.f32 %v1599, 1e-05
      %v1616 = vrsqrt.pop %v1600
      %v1617 = vrsqrt.pop %v1601
      %v1618 = vrsqrt.pop %v1602
      %v1619 = vrsqrt.pop %v1603
      %v1620 = vrsqrt.pop %v1604
      %v1621 = vrsqrt.pop %v1605
      %v1622 = vrsqrt.pop %v1606
      %v1623 = vrsqrt.pop %v1607
      %v1624 = vrsqrt.pop %v1608
      %v1625 = vrsqrt.pop %v1609
      %v1626 = vrsqrt.pop %v1610
      %v1627 = vrsqrt.pop %v1611
      %v1628 = vrsqrt.pop %v1612
      %v1629 = vrsqrt.pop %v1613
      %v1630 = vrsqrt.pop %v1614
      %v1631 = vrsqrt.pop %v1615
      %v1632 = vmul.f32 %v1504, %v1616
      %v1633 = vmul.f32 %v1505, %v1617
      %v1634 = vmul.f32 %v1506, %v1618
      %v1635 = vmul.f32 %v1507, %v1619
      %v1636 = vmul.f32 %v1508, %v1620
      %v1637 = vmul.f32 %v1509, %v1621
      %v1638 = vmul.f32 %v1510, %v1622
      %v1639 = vmul.f32 %v1511, %v1623
      %v1640 = vmul.f32 %v1512, %v1624
      %v1641 = vmul.f32 %v1513, %v1625
      %v1642 = vmul.f32 %v1514, %v1626
      %v1643 = vmul.f32 %v1515, %v1627
      %v1644 = vmul.f32 %v1516, %v1628
      %v1645 = vmul.f32 %v1517, %v1629
      %v1646 = vmul.f32 %v1518, %v1630
      %v1647 = vmul.f32 %v1519, %v1631
      %v1648 = vlaneseq
      %v1649 = vshrl.u32 %v1648, 7
      %v1650 = vsub.s32 3, %v1649
      %v1651 = vrot.slane %v419, %v1650
      %v1652 = vmul.f32 %v1632, %v1651
      %v1653 = vmul.f32 %v1633, %v1651
      %v1654 = vmul.f32 %v1634, %v1651
      %v1655 = vmul.f32 %v1635, %v1651
      %v1656 = vmul.f32 %v1636, %v1651
      %v1657 = vmul.f32 %v1637, %v1651
      %v1658 = vmul.f32 %v1638, %v1651
      %v1659 = vmul.f32 %v1639, %v1651
      %v1660 = vmul.f32 %v1640, %v1651
      %v1661 = vmul.f32 %v1641, %v1651
      %v1662 = vmul.f32 %v1642, %v1651
      %v1663 = vmul.f32 %v1643, %v1651
      %v1664 = vmul.f32 %v1644, %v1651
      %v1665 = vmul.f32 %v1645, %v1651
      %v1666 = vmul.f32 %v1646, %v1651
      %v1667 = vmul.f32 %v1647, %v1651
      %v1668 = vlaneseq
      %v1669 = vshrl.u32 %v1668, 7
      %v1670 = vsub.s32 4, %v1669
      %v1671 = vrot.slane %v419, %v1670
      %v1672 = vadd.f32 %v1652, %v1671
      %v1673 = vadd.f32 %v1653, %v1671
      %v1674 = vadd.f32 %v1654, %v1671
      %v1675 = vadd.f32 %v1655, %v1671
      %v1676 = vadd.f32 %v1656, %v1671
      %v1677 = vadd.f32 %v1657, %v1671
      %v1678 = vadd.f32 %v1658, %v1671
      %v1679 = vadd.f32 %v1659, %v1671
      %v1680 = vadd.f32 %v1660, %v1671
      %v1681 = vadd.f32 %v1661, %v1671
      %v1682 = vadd.f32 %v1662, %v1671
      %v1683 = vadd.f32 %v1663, %v1671
      %v1684 = vadd.f32 %v1664, %v1671
      %v1685 = vadd.f32 %v1665, %v1671
      %v1686 = vadd.f32 %v1666, %v1671
      %v1687 = vadd.f32 %v1667, %v1671
      %v1688 = vpack.c.bf16 %v1673, %v1672
      %v1689 = vpack.c.bf16 %v1675, %v1674
      %v1690 = vpack.c.bf16 %v1677, %v1676
      %v1691 = vpack.c.bf16 %v1679, %v1678
      %v1692 = vpack.c.bf16 %v1681, %v1680
      %v1693 = vpack.c.bf16 %v1683, %v1682
      %v1694 = vpack.c.bf16 %v1685, %v1684
      %v1695 = vpack.c.bf16 %v1687, %v1686
      %v1696 = vld [vmem:[%s351] sm:$0xff]
      %v1697 = vld [vmem:[%s351 + $0x8] sm:$0xff]
      %v1698 = vld [vmem:[%s351 + $0x10] sm:$0xff]
      %v1699 = vld [vmem:[%s351 + $0x18] sm:$0xff]
      %v1700 = vld [vmem:[%s351 + $0x20] sm:$0xff]
      %v1701 = vld [vmem:[%s351 + $0x28] sm:$0xff]
      %v1702 = vld [vmem:[%s351 + $0x30] sm:$0xff]
      %v1703 = vld [vmem:[%s351 + $0x38] sm:$0xff]
      %v1704 = vld [vmem:[%s364] sm:$0x3]
      %v1706 = vlaneseq
      %v1707 = vshrl.u32 %v1706, 7
      %v1708 = vsub.s32 0, %v1707
      %v1709 = vrot.slane %v1704, %v1708
      %v1710 = vlaneseq
      %v1711 = vshrl.u32 %v1710, 7
      %v1712 = vsub.s32 1, %v1711
      %v1713 = vrot.slane %v1704, %v1712
      %v1724 = vunpack.c.l.b16 %v1696
      %v1725 = vunpack.c.h.b16 %v1696
      %v1726 = vunpack.c.l.b16 %v1697
      %v1727 = vunpack.c.h.b16 %v1697
      %v1728 = vunpack.c.l.b16 %v1698
      %v1729 = vunpack.c.h.b16 %v1698
      %v1730 = vunpack.c.l.b16 %v1699
      %v1731 = vunpack.c.h.b16 %v1699
      %v1732 = vunpack.c.l.b16 %v1700
      %v1733 = vunpack.c.h.b16 %v1700
      %v1734 = vunpack.c.l.b16 %v1701
      %v1735 = vunpack.c.h.b16 %v1701
      %v1736 = vunpack.c.l.b16 %v1702
      %v1737 = vunpack.c.h.b16 %v1702
      %v1738 = vunpack.c.l.b16 %v1703
      %v1739 = vunpack.c.h.b16 %v1703
      %v1740 = vpack.c.b16 %v1726, %v1724
      %v1741 = vpack.c.b16 %v1727, %v1725
      %v1742 = vpack.c.b16 %v1730, %v1728
      %v1743 = vpack.c.b16 %v1731, %v1729
      %v1744 = vpack.c.b16 %v1734, %v1732
      %v1745 = vpack.c.b16 %v1735, %v1733
      %v1746 = vpack.c.b16 %v1738, %v1736
      %v1747 = vpack.c.b16 %v1739, %v1737
      %v1757 = vsel %vm420, %v1688, 0
      %v1760 = vsel %vm420, %v1689, 0
      %v1763 = vsel %vm420, %v1690, 0
      %v1766 = vsel %vm420, %v1691, 0
      %v1769 = vsel %vm420, %v1692, 0
      %v1772 = vsel %vm420, %v1693, 0
      %v1775 = vsel %vm420, %v1694, 0
      %v1778 = vsel %vm420, %v1695, 0
      %1780 = vmatprep.subr.bf16.mxu0 %v1741
      %1781 = vmatpush1.bf16.msra.mxu0 %v1740
      %1782 = vmatprep.subr.bf16.mxu0 %v1743
      %1783 = vmatpush1.bf16.msra.mxu0 %v1742
      %1784 = vmatprep.subr.bf16.mxu0 %v1745
      %1785 = vmatpush1.bf16.msra.mxu0 %v1744
      %1786 = vmatprep.subr.bf16.mxu0 %v1747
      %1787 = vmatpush1.bf16.msra.mxu0 %v1746
      %1788 = vmatprep.subr.bf16.mxu0 0
      %1789 = vmatpush1.bf16.msra.mxu0 0
      %1790 = vmatprep.subr.bf16.mxu0 0
      %1791 = vmatpush1.bf16.msra.mxu0 0
      %1792 = vmatprep.subr.bf16.mxu0 0
      %1793 = vmatpush1.bf16.msra.mxu0 0
      %1794 = vmatprep.subr.bf16.mxu0 0
      %1795 = vmatpush1.bf16.msra.mxu0 0
      %1796 = vmatprep.subr.bf16.mxu0 0
      %1797 = vmatpush1.bf16.msra.mxu0 0
      %1798 = vmatprep.subr.bf16.mxu0 0
      %1799 = vmatpush1.bf16.msra.mxu0 0
      %1800 = vmatprep.subr.bf16.mxu0 0
      %1801 = vmatpush1.bf16.msra.mxu0 0
      %1802 = vmatprep.subr.bf16.mxu0 0
      %1803 = vmatpush1.bf16.msra.mxu0 0
      %1804 = vmatprep.subr.bf16.mxu0 0
      %1805 = vmatpush1.bf16.msra.mxu0 0
      %1806 = vmatprep.subr.bf16.mxu0 0
      %1807 = vmatpush1.bf16.msra.mxu0 0
      %1808 = vmatprep.subr.bf16.mxu0 0
      %1809 = vmatpush1.bf16.msra.mxu0 0
      %1810 = vmatprep.subr.bf16.mxu0 0
      %1811 = vmatpush1.bf16.msra.mxu0 0
      %1812 = vmatprep.mubr.bf16.mxu0 0
      %1813 = vmatmul.mubr.bf16.gmra.mrb[0].mxu0 %v1757
      %v1814 = vpop.f32.mrb[0].mxu0
      %v1815 = vadd.f32 %v1709, %v1814
      %v1816 = vpop.f32.mrb[0].mxu0
      %v1817 = vadd.f32 %v1713, %v1816
      %v1818 = vpop.f32.mrb[0].mxu0
      %v1819 = vadd.f32 %v1709, %v1818
      %v1820 = vpop.f32.mrb[0].mxu0
      %v1821 = vadd.f32 %v1713, %v1820
      %1822 = vmatprep.mubr.bf16.mxu0 0
      %1823 = vmatmul.mubr.bf16.gmra.mrb[0].mxu0 %v1760
      %v1824 = vpop.f32.mrb[0].mxu0
      %v1825 = vadd.f32 %v1709, %v1824
      %v1826 = vpop.f32.mrb[0].mxu0
      %v1827 = vadd.f32 %v1713, %v1826
      %v1828 = vpop.f32.mrb[0].mxu0
      %v1829 = vadd.f32 %v1709, %v1828
      %v1830 = vpop.f32.mrb[0].mxu0
      %v1831 = vadd.f32 %v1713, %v1830
      %1832 = vmatprep.mubr.bf16.mxu0 0
      %1833 = vmatmul.mubr.bf16.gmra.mrb[0].mxu0 %v1763
      %v1834 = vpop.f32.mrb[0].mxu0
      %v1835 = vadd.f32 %v1709, %v1834
      %v1836 = vpop.f32.mrb[0].mxu0
      %v1837 = vadd.f32 %v1713, %v1836
      %v1838 = vpop.f32.mrb[0].mxu0
      %v1839 = vadd.f32 %v1709, %v1838
      %v1840 = vpop.f32.mrb[0].mxu0
      %v1841 = vadd.f32 %v1713, %v1840
      %1842 = vmatprep.mubr.bf16.mxu0 0
      %1843 = vmatmul.mubr.bf16.gmra.mrb[0].mxu0 %v1766
      %v1844 = vpop.f32.mrb[0].mxu0
      %v1845 = vadd.f32 %v1709, %v1844
      %v1846 = vpop.f32.mrb[0].mxu0
      %v1847 = vadd.f32 %v1713, %v1846
      %v1848 = vpop.f32.mrb[0].mxu0
      %v1849 = vadd.f32 %v1709, %v1848
      %v1850 = vpop.f32.mrb[0].mxu0
      %v1851 = vadd.f32 %v1713, %v1850
      %1852 = vmatprep.mubr.bf16.mxu0 0
      %1853 = vmatmul.mubr.bf16.gmra.mrb[0].mxu0 %v1769
      %v1854 = vpop.f32.mrb[0].mxu0
      %v1855 = vadd.f32 %v1709, %v1854
      %v1856 = vpop.f32.mrb[0].mxu0
      %v1857 = vadd.f32 %v1713, %v1856
      %v1858 = vpop.f32.mrb[0].mxu0
      %v1859 = vadd.f32 %v1709, %v1858
      %v1860 = vpop.f32.mrb[0].mxu0
      %v1861 = vadd.f32 %v1713, %v1860
      %1862 = vmatprep.mubr.bf16.mxu0 0
      %1863 = vmatmul.mubr.bf16.gmra.mrb[0].mxu0 %v1772
      %v1864 = vpop.f32.mrb[0].mxu0
      %v1865 = vadd.f32 %v1709, %v1864
      %v1866 = vpop.f32.mrb[0].mxu0
      %v1867 = vadd.f32 %v1713, %v1866
      %v1868 = vpop.f32.mrb[0].mxu0
      %v1869 = vadd.f32 %v1709, %v1868
      %v1870 = vpop.f32.mrb[0].mxu0
      %v1871 = vadd.f32 %v1713, %v1870
      %1872 = vmatprep.mubr.bf16.mxu0 0
      %1873 = vmatmul.mubr.bf16.gmra.mrb[0].mxu0 %v1775
      %v1874 = vpop.f32.mrb[0].mxu0
      %v1875 = vadd.f32 %v1709, %v1874
      %v1876 = vpop.f32.mrb[0].mxu0
      %v1877 = vadd.f32 %v1713, %v1876
      %v1878 = vpop.f32.mrb[0].mxu0
      %v1879 = vadd.f32 %v1709, %v1878
      %v1880 = vpop.f32.mrb[0].mxu0
      %v1881 = vadd.f32 %v1713, %v1880
      %1882 = vmatprep.mubr.bf16.mxu0 0
      %1883 = vmatmul.mubr.bf16.gmra.mrb[0].mxu0 %v1778
      %v1884 = vpop.f32.mrb[0].mxu0
      %v1885 = vadd.f32 %v1709, %v1884
      %v1886 = vpop.f32.mrb[0].mxu0
      %v1887 = vadd.f32 %v1713, %v1886
      %v1888 = vpop.f32.mrb[0].mxu0
      %v1889 = vadd.f32 %v1709, %v1888
      %v1890 = vpop.f32.mrb[0].mxu0
      %v1891 = vadd.f32 %v1713, %v1890
      %1892 = vdwg.mxu0
      %v1893 = vmul.f32 %v1815, 0.5
      %v1894 = vmul.f32 %v1817, 0.5
      %v1895 = vmul.f32 %v1819, 0.5
      %v1896 = vmul.f32 %v1821, 0.5
      %v1897 = vmul.f32 %v1825, 0.5
      %v1898 = vmul.f32 %v1827, 0.5
      %v1899 = vmul.f32 %v1829, 0.5
      %v1900 = vmul.f32 %v1831, 0.5
      %v1901 = vmul.f32 %v1835, 0.5
      %v1902 = vmul.f32 %v1837, 0.5
      %v1903 = vmul.f32 %v1839, 0.5
      %v1904 = vmul.f32 %v1841, 0.5
      %v1905 = vmul.f32 %v1845, 0.5
      %v1906 = vmul.f32 %v1847, 0.5
      %v1907 = vmul.f32 %v1849, 0.5
      %v1908 = vmul.f32 %v1851, 0.5
      %v1909 = vmul.f32 %v1855, 0.5
      %v1910 = vmul.f32 %v1857, 0.5
      %v1911 = vmul.f32 %v1859, 0.5
      %v1912 = vmul.f32 %v1861, 0.5
      %v1913 = vmul.f32 %v1865, 0.5
      %v1914 = vmul.f32 %v1867, 0.5
      %v1915 = vmul.f32 %v1869, 0.5
      %v1916 = vmul.f32 %v1871, 0.5
      %v1917 = vmul.f32 %v1875, 0.5
      %v1918 = vmul.f32 %v1877, 0.5
      %v1919 = vmul.f32 %v1879, 0.5
      %v1920 = vmul.f32 %v1881, 0.5
      %v1921 = vmul.f32 %v1885, 0.5
      %v1922 = vmul.f32 %v1887, 0.5
      %v1923 = vmul.f32 %v1889, 0.5
      %v1924 = vmul.f32 %v1891, 0.5
      %v1925 = vrcp.pop 1.4142135
      %v1926 = vmul.f32 %v1815, %v1925
      %v1927 = vmul.f32 %v1817, %v1925
      %v1928 = vmul.f32 %v1819, %v1925
      %v1929 = vmul.f32 %v1821, %v1925
      %v1930 = vmul.f32 %v1825, %v1925
      %v1931 = vmul.f32 %v1827, %v1925
      %v1932 = vmul.f32 %v1829, %v1925
      %v1933 = vmul.f32 %v1831, %v1925
      %v1934 = vmul.f32 %v1835, %v1925
      %v1935 = vmul.f32 %v1837, %v1925
      %v1936 = vmul.f32 %v1839, %v1925
      %v1937 = vmul.f32 %v1841, %v1925
      %v1938 = vmul.f32 %v1845, %v1925
      %v1939 = vmul.f32 %v1847, %v1925
      %v1940 = vmul.f32 %v1849, %v1925
      %v1941 = vmul.f32 %v1851, %v1925
      %v1942 = vmul.f32 %v1855, %v1925
      %v1943 = vmul.f32 %v1857, %v1925
      %v1944 = vmul.f32 %v1859, %v1925
      %v1945 = vmul.f32 %v1861, %v1925
      %v1946 = vmul.f32 %v1865, %v1925
      %v1947 = vmul.f32 %v1867, %v1925
      %v1948 = vmul.f32 %v1869, %v1925
      %v1949 = vmul.f32 %v1871, %v1925
      %v1950 = vmul.f32 %v1875, %v1925
      %v1951 = vmul.f32 %v1877, %v1925
      %v1952 = vmul.f32 %v1879, %v1925
      %v1953 = vmul.f32 %v1881, %v1925
      %v1954 = vmul.f32 %v1885, %v1925
      %v1955 = vmul.f32 %v1887, %v1925
      %v1956 = vmul.f32 %v1889, %v1925
      %v1957 = vmul.f32 %v1891, %v1925
      %v1958 = verf.f32.pop %v1926
      %v1959 = verf.f32.pop %v1927
      %v1960 = verf.f32.pop %v1928
      %v1961 = verf.f32.pop %v1929
      %v1962 = verf.f32.pop %v1930
      %v1963 = verf.f32.pop %v1931
      %v1964 = verf.f32.pop %v1932
      %v1965 = verf.f32.pop %v1933
      %v1966 = verf.f32.pop %v1934
      %v1967 = verf.f32.pop %v1935
      %v1968 = verf.f32.pop %v1936
      %v1969 = verf.f32.pop %v1937
      %v1970 = verf.f32.pop %v1938
      %v1971 = verf.f32.pop %v1939
      %v1972 = verf.f32.pop %v1940
      %v1973 = verf.f32.pop %v1941
      %v1974 = verf.f32.pop %v1942
      %v1975 = verf.f32.pop %v1943
      %v1976 = verf.f32.pop %v1944
      %v1977 = verf.f32.pop %v1945
      %v1978 = verf.f32.pop %v1946
      %v1979 = verf.f32.pop %v1947
      %v1980 = verf.f32.pop %v1948
      %v1981 = verf.f32.pop %v1949
      %v1982 = verf.f32.pop %v1950
      %v1983 = verf.f32.pop %v1951
      %v1984 = verf.f32.pop %v1952
      %v1985 = verf.f32.pop %v1953
      %v1986 = verf.f32.pop %v1954
      %v1987 = verf.f32.pop %v1955
      %v1988 = verf.f32.pop %v1956
      %v1989 = verf.f32.pop %v1957
      %v1990 = vadd.f32 %v1958, 1.0
      %v1991 = vadd.f32 %v1959, 1.0
      %v1992 = vadd.f32 %v1960, 1.0
      %v1993 = vadd.f32 %v1961, 1.0
      %v1994 = vadd.f32 %v1962, 1.0
      %v1995 = vadd.f32 %v1963, 1.0
      %v1996 = vadd.f32 %v1964, 1.0
      %v1997 = vadd.f32 %v1965, 1.0
      %v1998 = vadd.f32 %v1966, 1.0
      %v1999 = vadd.f32 %v1967, 1.0
      %v2000 = vadd.f32 %v1968, 1.0
      %v2001 = vadd.f32 %v1969, 1.0
      %v2002 = vadd.f32 %v1970, 1.0
      %v2003 = vadd.f32 %v1971, 1.0
      %v2004 = vadd.f32 %v1972, 1.0
      %v2005 = vadd.f32 %v1973, 1.0
      %v2006 = vadd.f32 %v1974, 1.0
      %v2007 = vadd.f32 %v1975, 1.0
      %v2008 = vadd.f32 %v1976, 1.0
      %v2009 = vadd.f32 %v1977, 1.0
      %v2010 = vadd.f32 %v1978, 1.0
      %v2011 = vadd.f32 %v1979, 1.0
      %v2012 = vadd.f32 %v1980, 1.0
      %v2013 = vadd.f32 %v1981, 1.0
      %v2014 = vadd.f32 %v1982, 1.0
      %v2015 = vadd.f32 %v1983, 1.0
      %v2016 = vadd.f32 %v1984, 1.0
      %v2017 = vadd.f32 %v1985, 1.0
      %v2018 = vadd.f32 %v1986, 1.0
      %v2019 = vadd.f32 %v1987, 1.0
      %v2020 = vadd.f32 %v1988, 1.0
      %v2021 = vadd.f32 %v1989, 1.0
      %v2022 = vmul.f32 %v1893, %v1990
      %v2023 = vmul.f32 %v1894, %v1991
      %v2024 = vmul.f32 %v1895, %v1992
      %v2025 = vmul.f32 %v1896, %v1993
      %v2026 = vmul.f32 %v1897, %v1994
      %v2027 = vmul.f32 %v1898, %v1995
      %v2028 = vmul.f32 %v1899, %v1996
      %v2029 = vmul.f32 %v1900, %v1997
      %v2030 = vmul.f32 %v1901, %v1998
      %v2031 = vmul.f32 %v1902, %v1999
      %v2032 = vmul.f32 %v1903, %v2000
      %v2033 = vmul.f32 %v1904, %v2001
      %v2034 = vmul.f32 %v1905, %v2002
      %v2035 = vmul.f32 %v1906, %v2003
      %v2036 = vmul.f32 %v1907, %v2004
      %v2037 = vmul.f32 %v1908, %v2005
      %v2038 = vmul.f32 %v1909, %v2006
      %v2039 = vmul.f32 %v1910, %v2007
      %v2040 = vmul.f32 %v1911, %v2008
      %v2041 = vmul.f32 %v1912, %v2009
      %v2042 = vmul.f32 %v1913, %v2010
      %v2043 = vmul.f32 %v1914, %v2011
      %v2044 = vmul.f32 %v1915, %v2012
      %v2045 = vmul.f32 %v1916, %v2013
      %v2046 = vmul.f32 %v1917, %v2014
      %v2047 = vmul.f32 %v1918, %v2015
      %v2048 = vmul.f32 %v1919, %v2016
      %v2049 = vmul.f32 %v1920, %v2017
      %v2050 = vmul.f32 %v1921, %v2018
      %v2051 = vmul.f32 %v1922, %v2019
      %v2052 = vmul.f32 %v1923, %v2020
      %v2053 = vmul.f32 %v1924, %v2021
      %v2054 = vpack.c.bf16 %v2024, %v2022
      %v2055 = vpack.c.bf16 %v2025, %v2023
      %v2056 = vpack.c.bf16 %v2028, %v2026
      %v2057 = vpack.c.bf16 %v2029, %v2027
      %v2058 = vpack.c.bf16 %v2032, %v2030
      %v2059 = vpack.c.bf16 %v2033, %v2031
      %v2060 = vpack.c.bf16 %v2036, %v2034
      %v2061 = vpack.c.bf16 %v2037, %v2035
      %v2062 = vpack.c.bf16 %v2040, %v2038
      %v2063 = vpack.c.bf16 %v2041, %v2039
      %v2064 = vpack.c.bf16 %v2044, %v2042
      %v2065 = vpack.c.bf16 %v2045, %v2043
      %v2066 = vpack.c.bf16 %v2048, %v2046
      %v2067 = vpack.c.bf16 %v2049, %v2047
      %v2068 = vpack.c.bf16 %v2052, %v2050
      %v2069 = vpack.c.bf16 %v2053, %v2051
      %v2070 = vld [vmem:[%s356] sm:$0xf]
      %v2071 = vld [vmem:[%s356 + $0x4] sm:$0xf]
      %v2072 = vld [vmem:[%s356 + $0x8] sm:$0xf]
      %v2073 = vld [vmem:[%s356 + $0xc] sm:$0xf]
      %v2074 = vld [vmem:[%s356 + $0x10] sm:$0xf]
      %v2075 = vld [vmem:[%s356 + $0x14] sm:$0xf]
      %v2076 = vld [vmem:[%s356 + $0x18] sm:$0xf]
      %v2077 = vld [vmem:[%s356 + $0x1c] sm:$0xf]
      %v2078 = vld [vmem:[%s356 + $0x20] sm:$0xf]
      %v2079 = vld [vmem:[%s356 + $0x24] sm:$0xf]
      %v2080 = vld [vmem:[%s356 + $0x28] sm:$0xf]
      %v2081 = vld [vmem:[%s356 + $0x2c] sm:$0xf]
      %v2082 = vld [vmem:[%s356 + $0x30] sm:$0xf]
      %v2083 = vld [vmem:[%s356 + $0x34] sm:$0xf]
      %v2084 = vld [vmem:[%s356 + $0x38] sm:$0xf]
      %v2085 = vld [vmem:[%s356 + $0x3c] sm:$0xf]
      %v2086 = vld [vmem:[%s356 + $0x40] sm:$0xf]
      %v2087 = vld [vmem:[%s356 + $0x44] sm:$0xf]
      %v2088 = vld [vmem:[%s356 + $0x48] sm:$0xf]
      %v2089 = vld [vmem:[%s356 + $0x4c] sm:$0xf]
      %v2090 = vld [vmem:[%s356 + $0x50] sm:$0xf]
      %v2091 = vld [vmem:[%s356 + $0x54] sm:$0xf]
      %v2092 = vld [vmem:[%s356 + $0x58] sm:$0xf]
      %v2093 = vld [vmem:[%s356 + $0x5c] sm:$0xf]
      %v2094 = vld [vmem:[%s356 + $0x60] sm:$0xf]
      %v2095 = vld [vmem:[%s356 + $0x64] sm:$0xf]
      %v2096 = vld [vmem:[%s356 + $0x68] sm:$0xf]
      %v2097 = vld [vmem:[%s356 + $0x6c] sm:$0xf]
      %v2098 = vld [vmem:[%s356 + $0x70] sm:$0xf]
      %v2099 = vld [vmem:[%s356 + $0x74] sm:$0xf]
      %v2100 = vld [vmem:[%s356 + $0x78] sm:$0xf]
      %v2101 = vld [vmem:[%s356 + $0x7c] sm:$0xf]
      %v2102 = vlaneseq
      %v2103 = vshrl.u32 %v2102, 7
      %v2104 = vsub.s32 5, %v2103
      %v2105 = vrot.slane %v419, %v2104
      %v2138 = vunpack.c.l.b16 %v2070
      %v2139 = vunpack.c.l.b16 %v2071
      %v2140 = vunpack.c.l.b16 %v2072
      %v2141 = vunpack.c.l.b16 %v2073
      %v2142 = vunpack.c.l.b16 %v2074
      %v2143 = vunpack.c.l.b16 %v2075
      %v2144 = vunpack.c.l.b16 %v2076
      %v2145 = vunpack.c.l.b16 %v2077
      %v2146 = vunpack.c.l.b16 %v2078
      %v2147 = vunpack.c.l.b16 %v2079
      %v2148 = vunpack.c.l.b16 %v2080
      %v2149 = vunpack.c.l.b16 %v2081
      %v2150 = vunpack.c.l.b16 %v2082
      %v2151 = vunpack.c.l.b16 %v2083
      %v2152 = vunpack.c.l.b16 %v2084
      %v2153 = vunpack.c.l.b16 %v2085
      %v2154 = vunpack.c.l.b16 %v2086
      %v2155 = vunpack.c.l.b16 %v2087
      %v2156 = vunpack.c.l.b16 %v2088
      %v2157 = vunpack.c.l.b16 %v2089
      %v2158 = vunpack.c.l.b16 %v2090
      %v2159 = vunpack.c.l.b16 %v2091
      %v2160 = vunpack.c.l.b16 %v2092
      %v2161 = vunpack.c.l.b16 %v2093
      %v2162 = vunpack.c.l.b16 %v2094
      %v2163 = vunpack.c.l.b16 %v2095
      %v2164 = vunpack.c.l.b16 %v2096
      %v2165 = vunpack.c.l.b16 %v2097
      %v2166 = vunpack.c.l.b16 %v2098
      %v2167 = vunpack.c.l.b16 %v2099
      %v2168 = vunpack.c.l.b16 %v2100
      %v2169 = vunpack.c.l.b16 %v2101
      %v2170 = vpack.c.b16 %v2139, %v2138
      %v2171 = vpack.c.b16 %v2141, %v2140
      %v2172 = vpack.c.b16 %v2143, %v2142
      %v2173 = vpack.c.b16 %v2145, %v2144
      %v2174 = vpack.c.b16 %v2147, %v2146
      %v2175 = vpack.c.b16 %v2149, %v2148
      %v2176 = vpack.c.b16 %v2151, %v2150
      %v2177 = vpack.c.b16 %v2153, %v2152
      %v2178 = vpack.c.b16 %v2155, %v2154
      %v2179 = vpack.c.b16 %v2157, %v2156
      %v2180 = vpack.c.b16 %v2159, %v2158
      %v2181 = vpack.c.b16 %v2161, %v2160
      %v2182 = vpack.c.b16 %v2163, %v2162
      %v2183 = vpack.c.b16 %v2165, %v2164
      %v2184 = vpack.c.b16 %v2167, %v2166
      %v2185 = vpack.c.b16 %v2169, %v2168
      %2202 = vmatprep.subr.bf16.mxu0 0
      %2203 = vmatpush1.bf16.msra.mxu0 %v2170
      %2204 = vmatprep.subr.bf16.mxu0 0
      %2205 = vmatpush1.bf16.msra.mxu0 %v2171
      %2206 = vmatprep.subr.bf16.mxu0 0
      %2207 = vmatpush1.bf16.msra.mxu0 %v2172
      %2208 = vmatprep.subr.bf16.mxu0 0
      %2209 = vmatpush1.bf16.msra.mxu0 %v2173
      %2210 = vmatprep.subr.bf16.mxu0 0
      %2211 = vmatpush1.bf16.msra.mxu0 %v2174
      %2212 = vmatprep.subr.bf16.mxu0 0
      %2213 = vmatpush1.bf16.msra.mxu0 %v2175
      %2214 = vmatprep.subr.bf16.mxu0 0
      %2215 = vmatpush1.bf16.msra.mxu0 %v2176
      %2216 = vmatprep.subr.bf16.mxu0 0
      %2217 = vmatpush1.bf16.msra.mxu0 %v2177
      %2218 = vmatprep.subr.bf16.mxu0 0
      %2219 = vmatpush1.bf16.msra.mxu0 %v2178
      %2220 = vmatprep.subr.bf16.mxu0 0
      %2221 = vmatpush1.bf16.msra.mxu0 %v2179
      %2222 = vmatprep.subr.bf16.mxu0 0
      %2223 = vmatpush1.bf16.msra.mxu0 %v2180
      %2224 = vmatprep.subr.bf16.mxu0 0
      %2225 = vmatpush1.bf16.msra.mxu0 %v2181
      %2226 = vmatprep.subr.bf16.mxu0 0
      %2227 = vmatpush1.bf16.msra.mxu0 %v2182
      %2228 = vmatprep.subr.bf16.mxu0 0
      %2229 = vmatpush1.bf16.msra.mxu0 %v2183
      %2230 = vmatprep.subr.bf16.mxu0 0
      %2231 = vmatpush1.bf16.msra.mxu0 %v2184
      %2232 = vmatprep.subr.bf16.mxu0 0
      %2233 = vmatpush1.bf16.msra.mxu0 %v2185
      %2234 = vmatprep.mubr.bf16.mxu0 %v2055
      %2235 = vmatmul.mubr.bf16.gmra.mrb[0].mxu0 %v2054
      %v2236 = vpop.f32.mrb[0].mxu0
      %v2237 = vadd.f32 %v2105, %v2236
      %v2238 = vpop.f32.mrb[0].mxu0
      %v2239 = vpop.f32.mrb[0].mxu0
      %v2240 = vadd.f32 %v2105, %v2239
      %v2241 = vpop.f32.mrb[0].mxu0
      %2242 = vmatprep.mubr.bf16.mxu0 %v2057
      %2243 = vmatmul.mubr.bf16.gmra.mrb[0].mxu0 %v2056
      %v2244 = vpop.f32.mrb[0].mxu0
      %v2245 = vadd.f32 %v2105, %v2244
      %v2246 = vpop.f32.mrb[0].mxu0
      %v2247 = vpop.f32.mrb[0].mxu0
      %v2248 = vadd.f32 %v2105, %v2247
      %v2249 = vpop.f32.mrb[0].mxu0
      %2250 = vmatprep.mubr.bf16.mxu0 %v2059
      %2251 = vmatmul.mubr.bf16.gmra.mrb[0].mxu0 %v2058
      %v2252 = vpop.f32.mrb[0].mxu0
      %v2253 = vadd.f32 %v2105, %v2252
      %v2254 = vpop.f32.mrb[0].mxu0
      %v2255 = vpop.f32.mrb[0].mxu0
      %v2256 = vadd.f32 %v2105, %v2255
      %v2257 = vpop.f32.mrb[0].mxu0
      %2258 = vmatprep.mubr.bf16.mxu0 %v2061
      %2259 = vmatmul.mubr.bf16.gmra.mrb[0].mxu0 %v2060
      %v2260 = vpop.f32.mrb[0].mxu0
      %v2261 = vadd.f32 %v2105, %v2260
      %v2262 = vpop.f32.mrb[0].mxu0
      %v2263 = vpop.f32.mrb[0].mxu0
      %v2264 = vadd.f32 %v2105, %v2263
      %v2265 = vpop.f32.mrb[0].mxu0
      %2266 = vmatprep.mubr.bf16.mxu0 %v2063
      %2267 = vmatmul.mubr.bf16.gmra.mrb[0].mxu0 %v2062
      %v2268 = vpop.f32.mrb[0].mxu0
      %v2269 = vadd.f32 %v2105, %v2268
      %v2270 = vpop.f32.mrb[0].mxu0
      %v2271 = vpop.f32.mrb[0].mxu0
      %v2272 = vadd.f32 %v2105, %v2271
      %v2273 = vpop.f32.mrb[0].mxu0
      %2274 = vmatprep.mubr.bf16.mxu0 %v2065
      %2275 = vmatmul.mubr.bf16.gmra.mrb[0].mxu0 %v2064
      %v2276 = vpop.f32.mrb[0].mxu0
      %v2277 = vadd.f32 %v2105, %v2276
      %v2278 = vpop.f32.mrb[0].mxu0
      %v2279 = vpop.f32.mrb[0].mxu0
      %v2280 = vadd.f32 %v2105, %v2279
      %v2281 = vpop.f32.mrb[0].mxu0
      %2282 = vmatprep.mubr.bf16.mxu0 %v2067
      %2283 = vmatmul.mubr.bf16.gmra.mrb[0].mxu0 %v2066
      %v2284 = vpop.f32.mrb[0].mxu0
      %v2285 = vadd.f32 %v2105, %v2284
      %v2286 = vpop.f32.mrb[0].mxu0
      %v2287 = vpop.f32.mrb[0].mxu0
      %v2288 = vadd.f32 %v2105, %v2287
      %v2289 = vpop.f32.mrb[0].mxu0
      %2290 = vmatprep.mubr.bf16.mxu0 %v2069
      %2291 = vmatmul.mubr.bf16.gmra.mrb[0].mxu0 %v2068
      %v2292 = vpop.f32.mrb[0].mxu0
      %v2293 = vadd.f32 %v2105, %v2292
      %v2294 = vpop.f32.mrb[0].mxu0
      %v2295 = vpop.f32.mrb[0].mxu0
      %v2296 = vadd.f32 %v2105, %v2295
      %v2297 = vpop.f32.mrb[0].mxu0
      %2298 = vdwg.mxu0
      %v2299 = vadd.f32 %v1424, %v2237
      %v2300 = vadd.f32 %v1425, %v2240
      %v2301 = vadd.f32 %v1426, %v2245
      %v2302 = vadd.f32 %v1427, %v2248
      %v2303 = vadd.f32 %v1428, %v2253
      %v2304 = vadd.f32 %v1429, %v2256
      %v2305 = vadd.f32 %v1430, %v2261
      %v2306 = vadd.f32 %v1431, %v2264
      %v2307 = vadd.f32 %v1432, %v2269
      %v2308 = vadd.f32 %v1433, %v2272
      %v2309 = vadd.f32 %v1434, %v2277
      %v2310 = vadd.f32 %v1435, %v2280
      %v2311 = vadd.f32 %v1436, %v2285
      %v2312 = vadd.f32 %v1437, %v2288
      %v2313 = vadd.f32 %v1438, %v2293
      %v2314 = vadd.f32 %v1439, %v2296
      %2315 = vst.msk [vmem:[%s8] sm:$0xff] %vm420, %v2299
      %2316 = vst.msk [vmem:[%s8 + $0x8] sm:$0xff] %vm420, %v2300
      %2317 = vst.msk [vmem:[%s8 + $0x10] sm:$0xff] %vm420, %v2301
      %2318 = vst.msk [vmem:[%s8 + $0x18] sm:$0xff] %vm420, %v2302
      %2319 = vst.msk [vmem:[%s8 + $0x20] sm:$0xff] %vm420, %v2303
      %2320 = vst.msk [vmem:[%s8 + $0x28] sm:$0xff] %vm420, %v2304
      %2321 = vst.msk [vmem:[%s8 + $0x30] sm:$0xff] %vm420, %v2305
      %2322 = vst.msk [vmem:[%s8 + $0x38] sm:$0xff] %vm420, %v2306
      %2323 = vst.msk [vmem:[%s8 + $0x40] sm:$0xff] %vm420, %v2307
      %2324 = vst.msk [vmem:[%s8 + $0x48] sm:$0xff] %vm420, %v2308
      %2325 = vst.msk [vmem:[%s8 + $0x50] sm:$0xff] %vm420, %v2309
      %2326 = vst.msk [vmem:[%s8 + $0x58] sm:$0xff] %vm420, %v2310
      %2327 = vst.msk [vmem:[%s8 + $0x60] sm:$0xff] %vm420, %v2311
      %2328 = vst.msk [vmem:[%s8 + $0x68] sm:$0xff] %vm420, %v2312
      %2329 = vst.msk [vmem:[%s8 + $0x70] sm:$0xff] %vm420, %v2313
      %2330 = vst.msk [vmem:[%s8 + $0x78] sm:$0xff] %vm420, %v2314
      // Predicated region
      $region57: #{tpu_custom_call.1} parent=51 // pred_check
        %p2331 = pneg %p225
      $region58: #{tpu_custom_call.1} parent=51 // pred_check_branch
        %2333 = sbr.rel (%p2331) target = $region60
      $region59: #{tpu_custom_call.1} parent=51 // pred_region
        _
      $region60: #{tpu_custom_call.1} parent=51 // pred_fallthru
        _
      // Predicated region
      $region61: #{tpu_custom_call.1} parent=51 // pred_check
        %p2334 = pneg %p225
      $region62: #{tpu_custom_call.1} parent=51 // pred_check_branch
        %2336 = sbr.rel (%p2334) target = $region64
      $region63: #{tpu_custom_call.1} parent=51 // pred_region
        _
      $region64: #{tpu_custom_call.1} parent=51 // pred_fallthru
        _
    $region52: #{tpu_custom_call.1} parent=5 // pred_fallthru
      _
    %p2337 = scmp.le.s32.totalorder 2, %s14
    // Predicated region
    $region65: #{tpu_custom_call.1} parent=5 // pred_check
      %p2338 = pneg %p2337
    $region66: #{tpu_custom_call.1} parent=5 // pred_check_branch
      %2340 = sbr.rel (%p2338) target = $region68
    $region67: #{tpu_custom_call.1} parent=5 // pred_region
      %s2341 = ssub.s32 %s14, 2
    $region68: #{tpu_custom_call.1} parent=5 // pred_fallthru
      _
  $region6: #{tpu_custom_call.1} parent=0 // loop_footer
    %s18 = sadd.s32 1, %s14
  $region7: #{tpu_custom_call.1} parent=0 // loop_footer_branch
    %13 = sbr.rel target = $region3
  $region8: #{tpu_custom_call.1} parent=0 // loop_exit
    _

</llo_original>
